<compile_context>
chip_gen: v5e
topology: v5e:2x2
jax: 0.10.0
libtpu: 0.0.40
codegen_flags: <defaults>
</compile_context>

<pallas_src>
import functools

import numpy as np
import jax
import jax.numpy as jnp
from jax.experimental import pallas as pl
from jax.experimental.pallas import tpu as pltpu


# ----------------------------------------------------------------------------
# Fused kernel: one grid step = one chunk of images (pred|gt folded into lanes).
# ----------------------------------------------------------------------------
def _fused_kernel(x_ref, w1_ref, b1_ref, w2_ref, b2_ref, mask_ref,
                  out_ref, patches_ref, *, W, C, L):

    def conv3x3_relu(x, w_ref_, b_ref_):
        # x: (C, L) with the (images x spatial) axis flattened onto lanes.
        # Build the im2col patch matrix (9*C, L) in aligned VMEM scratch, then
        # a single MXU dot -> lane-dense (Cout, L) output.
        t = 0
        for dy in (-1, 0, 1):
            for dx in (-1, 0, 1):
                s = dy * W + dx                       # flat source offset
                if s == 0:
                    patches_ref[t * C:(t + 1) * C, :] = x
                else:
                    # piece[p] = x[p + s], zeroed where (y+dy, x+dx) is OOB for
                    # the image that owns lane p (also kills cross-image wrap).
                    shifted = pltpu.roll(x, shift=(-s) % L, axis=1)
                    patches_ref[t * C:(t + 1) * C, :] = (
                        shifted * mask_ref[t * C:(t + 1) * C, :])
                t += 1
        out = jnp.dot(w_ref_[...], patches_ref[...],
                      preferred_element_type=jnp.float32)
        return jnp.maximum(out + b_ref_[...], 0.0)

    x = x_ref[0]                                 # (C, L): [pred | gt] lanes
    f1 = conv3x3_relu(x, w1_ref, b1_ref)         # layer index 1 output (relu1)
    f2 = conv3x3_relu(f1, w2_ref, b2_ref)        # layer index 3 output (relu2)

    half = L // 2                                # pred lanes | gt lanes split

    def sl1_lane_partial(f):                     # SmoothL1 (beta=1), sublane-
        d = f[:, :half] - f[:, half:]            # reduced, un-normalized
        ad = jnp.abs(d)
        terms = jnp.where(ad < 1.0, 0.5 * d * d, ad - 0.5)
        return jnp.sum(terms, axis=0, keepdims=True)      # (1, half)

    # Lane-dense per-layer partial sums (row 0 = layer 1, row 1 = layer 3).
    out_ref[0, 0:1, :] = sl1_lane_partial(f1)
    out_ref[0, 1:2, :] = sl1_lane_partial(f2)


# ----------------------------------------------------------------------------
# Host-side (trace-time) weight / mask repacking.
# ----------------------------------------------------------------------------
def _conv_weight_to_mat(w, cin_padded):
    """(3,3,Cin,Cout) HWIO -> (Cout, 9*cin_padded), tap-major (kh*3 + kw)."""
    kh, kw, cin, cout = w.shape
    assert (kh, kw) == (3, 3)
    w9 = jnp.transpose(w, (3, 0, 1, 2)).reshape(cout, 9, cin)
    if cin_padded > cin:
        w9 = jnp.pad(w9, ((0, 0), (0, 0), (0, cin_padded - cin)))
    return w9.reshape(cout, 9 * cin_padded).astype(jnp.float32)


def _boundary_masks(H, W, n_images, C):
    """(9*C, n_images*H*W) 0/1 masks, pre-broadcast so every tap's mask slice
    is an 8-sublane-aligned (C, L) block (plain VPU multiply, no relayout)."""
    yy, xx = np.meshgrid(np.arange(H), np.arange(W), indexing="ij")
    rows = []
    for dy in (-1, 0, 1):
        for dx in (-1, 0, 1):
            valid = ((yy + dy >= 0) & (yy + dy < H) &
                     (xx + dx >= 0) & (xx + dx < W))
            rows.append(valid.reshape(-1).astype(np.float32))
    m = np.stack(rows, axis=0)                   # (9, HW)
    m = np.tile(m, (1, n_images))                # (9, n_images*HW)
    m = np.repeat(m, C, axis=0)                  # (9*C, n_images*HW)
    return jnp.asarray(m)


# ----------------------------------------------------------------------------
# SubModel forward.
# ----------------------------------------------------------------------------
@jax.jit
def submodel_forward(pred_nchw, gt_nchw, w1, b1, w2, b2):
    N, Cin, H, W = pred_nchw.shape
    HW = H * W
    C1 = w1.shape[-1]
    C2 = w2.shape[-1]
    C = 8                                        # channel tile (sublane multiple)
    assert HW % 128 == 0, "spatial size must be lane-dense (multiple of 128)"
    assert Cin <= C and C1 == C and C2 == C

    # v7x has 2 TensorCores -> keep 2 'parallel' grid chunks when possible.
    # On single-TC v5e/v6e this still collapses N grid steps (and N pairs of
    # tiny DMAs) down to 2, and each step's MXU dot is N/2 x wider.
    num_chunks = 2 if (N >= 2 and N % 2 == 0) else 1
    ipc = N // num_chunks                        # images per chunk
    L = 2 * ipc * HW                             # lane extent: [pred | gt]
    half = L // 2

    def chunkify(x):
        # (N, Cin, H, W) -> (num_chunks, C, ipc*HW); tiny one-time XLA
        # transpose (layout plumbing), channels zero-padded 3 -> 8 so every
        # im2col piece is 8-sublane aligned (padded rows have zero weights).
        x = x.reshape(N, Cin, HW).astype(jnp.float32)
        x = jnp.pad(x, ((0, 0), (0, C - Cin), (0, 0)))
        x = x.reshape(num_chunks, ipc, C, HW)
        return jnp.transpose(x, (0, 2, 1, 3)).reshape(num_chunks, C, ipc * HW)

    x_all = jnp.concatenate([chunkify(pred_nchw), chunkify(gt_nchw)], axis=-1)

    w1_mat = _conv_weight_to_mat(w1, C)          # (8, 72)
    w2_mat = _conv_weight_to_mat(w2, C)          # (8, 72)
    b1c = b1.reshape(C1, 1).astype(jnp.float32)
    b2c = b2.reshape(C2, 1).astype(jnp.float32)
    masks = _boundary_masks(H, W, 2 * ipc, C)    # (9*C, L)

    kernel = functools.partial(_fused_kernel, W=W, C=C, L=L)

    flops = 2 * 2 * num_chunks * C * (9 * C) * L   # 2 convs, all chunks
    bytes_accessed = 4 * (x_all.size + w1_mat.size + w2_mat.size + b1c.size +
                          b2c.size + masks.size + num_chunks * 2 * half)

    partials = pl.pallas_call(
        kernel,
        out_shape=jax.ShapeDtypeStruct((num_chunks, 2, half), jnp.float32),
        grid_spec=pltpu.PrefetchScalarGridSpec(
            num_scalar_prefetch=0,
            grid=(num_chunks,),
            in_specs=[
                pl.BlockSpec((1, C, L), lambda n: (n, 0, 0)),     # pred|gt lanes
                pl.BlockSpec((C1, 9 * C), lambda n: (0, 0)),      # w1 (resident)
                pl.BlockSpec((C1, 1), lambda n: (0, 0)),          # b1
                pl.BlockSpec((C2, 9 * C), lambda n: (0, 0)),      # w2 (resident)
                pl.BlockSpec((C2, 1), lambda n: (0, 0)),          # b2
                pl.BlockSpec((9 * C, L), lambda n: (0, 0)),       # boundary masks
            ],
            out_specs=pl.BlockSpec((1, 2, half), lambda n: (n, 0, 0)),
            scratch_shapes=[pltpu.VMEM((9 * C, L), jnp.float32)],
        ),
        compiler_params=pltpu.CompilerParams(
            dimension_semantics=("parallel",)),
        cost_estimate=pl.CostEstimate(flops=flops, transcendentals=0,
                                      bytes_accessed=bytes_accessed),
    )(x_all, w1_mat, b1c, w2_mat, b2c, masks)

    # SmoothL1 'mean' normalization + sum over the two selected layers
    # (tiny scalar epilogue in XLA; safe with the parallel chunk axis).
    loss = (jnp.sum(partials[:, 0, :]) / (N * C1 * HW) +
            jnp.sum(partials[:, 1, :]) / (N * C2 * HW))
    return loss


def make_params():
    k = jax.random.PRNGKey(42)
    k1, k2, k3, k4 = jax.random.split(k, 4)
    w1 = 0.1 * jax.random.normal(k1, (3, 3, 3, 8), jnp.float32)   # HWIO
    b1 = 0.01 * jax.random.normal(k2, (8,), jnp.float32)
    w2 = 0.1 * jax.random.normal(k3, (3, 3, 8, 8), jnp.float32)
    b2 = 0.01 * jax.random.normal(k4, (8,), jnp.float32)
    return (w1, b1), (w2, b2)


@jax.jit
def _reference_loss(pred, gt, w1, b1, w2, b2):
    """Pure-XLA reference used only for the correctness check."""
    dn = ("NCHW", "HWIO", "NCHW")

    def feats(x):
        f1 = jax.lax.conv_general_dilated(
            x, w1, (1, 1), "SAME", dimension_numbers=dn,
            precision=jax.lax.Precision.HIGHEST)
        f1 = jnp.maximum(f1 + b1.reshape(1, -1, 1, 1), 0.0)
        f2 = jax.lax.conv_general_dilated(
            f1, w2, (1, 1), "SAME", dimension_numbers=dn,
            precision=jax.lax.Precision.HIGHEST)
        f2 = jnp.maximum(f2 + b2.reshape(1, -1, 1, 1), 0.0)
        return f1, f2

    def sl1(a, b):
        d = a - b
        ad = jnp.abs(d)
        return jnp.mean(jnp.where(ad < 1.0, 0.5 * d * d, ad - 0.5))

    p1, p2 = feats(pred)
    g1, g2 = feats(gt)
    return sl1(p1, g1) + sl1(p2, g2)


if __name__ == "__main__":
    key = jax.random.PRNGKey(0)
    kp, kg = jax.random.split(key)
    # Small NCHW inputs consistent with an image-feature loss: batch=2, C=3, 16x16.
    pred = jax.random.normal(kp, (2, 3, 16, 16), jnp.float32)
    gt = jax.random.normal(kg, (2, 3, 16, 16), jnp.float32)

    (w1, b1), (w2, b2) = make_params()
    loss = submodel_forward(pred, gt, w1, b1, w2, b2)
    jax.block_until_ready(loss)

    # Sanity + numerical check against a pure-XLA reference (also acts as the
    # regression test that the boundary masks cover every cross-image wrap).
    ref = _reference_loss(pred, gt, w1, b1, w2, b2)
    assert loss.shape == ()
    assert bool(jnp.isfinite(loss))
    assert float(loss) >= 0.0
    assert jnp.allclose(loss, ref, rtol=2e-3, atol=1e-5), (float(loss), float(ref))
    print("KERNEL_OK")
</pallas_src>

<mosaic_0001>
module attributes {stable_mosaic.version = 11 : i64} {
  func.func @_fused_kernel(%arg0: i32, %arg1: memref<1x8x512xf32, #tpu.memory_space<vmem>>, %arg2: memref<8x72xf32, #tpu.memory_space<vmem>>, %arg3: memref<8x1xf32, #tpu.memory_space<vmem>>, %arg4: memref<8x72xf32, #tpu.memory_space<vmem>>, %arg5: memref<8x1xf32, #tpu.memory_space<vmem>>, %arg6: memref<72x512xf32, #tpu.memory_space<vmem>>, %arg7: memref<1x2x256xf32, #tpu.memory_space<vmem>>, %arg8: memref<72x512xf32, #tpu.memory_space<vmem>>) attributes {dimension_semantics = [#tpu.dimension_semantics<parallel>], iteration_bounds = array<i64: 2>, scalar_prefetch = 0 : i64, scratch_operands = 1 : i64, tpu.core_type = #tpu.core_type<tc>, window_params = [{transform_indices = @transform_0, window_bounds = array<i64: 1, 8, 512>}, {pipeline_mode = #tpu.pipeline_mode<synchronous>, transform_indices = @transform_1, window_bounds = array<i64: 8, 72>}, {pipeline_mode = #tpu.pipeline_mode<synchronous>, transform_indices = @transform_2, window_bounds = array<i64: 8, 1>}, {pipeline_mode = #tpu.pipeline_mode<synchronous>, transform_indices = @transform_3, window_bounds = array<i64: 8, 72>}, {pipeline_mode = #tpu.pipeline_mode<synchronous>, transform_indices = @transform_4, window_bounds = array<i64: 8, 1>}, {pipeline_mode = #tpu.pipeline_mode<synchronous>, transform_indices = @transform_5, window_bounds = array<i64: 72, 512>}, {transform_indices = @transform_6, window_bounds = array<i64: 1, 2, 256>}]} {
    %c0 = arith.constant 0 : index
    %c0_0 = arith.constant 0 : index
    %c0_1 = arith.constant 0 : index
    %0 = vector.load %arg1[%c0, %c0_0, %c0_1] : memref<1x8x512xf32, #tpu.memory_space<vmem>>, vector<1x8x512xf32>
    %1 = vector.shape_cast %0 : vector<1x8x512xf32> to vector<8x512xf32>
    %c17_i32 = arith.constant 17 : i32
    %2 = tpu.dynamic_rotate %1 by %c17_i32 dim 1 : vector<8x512xf32>, i32 -> vector<8x512xf32>
    %c0_2 = arith.constant 0 : index
    %c0_3 = arith.constant 0 : index
    %3 = vector.load %arg6[%c0_2, %c0_3] : memref<72x512xf32, #tpu.memory_space<vmem>>, vector<8x512xf32>
    %4 = arith.mulf %2, %3 : vector<8x512xf32>
    %c0_4 = arith.constant 0 : index
    %c0_5 = arith.constant 0 : index
    %5 = vector.load %arg8[%c0_4, %c0_5] : memref<72x512xf32, #tpu.memory_space<vmem>>, vector<8x512xf32>
    tpu.vector_store %arg8[%c0_4, %c0_5], %4 {strides = array<i32>} : memref<72x512xf32, #tpu.memory_space<vmem>>, vector<8x512xf32>,
    %c16_i32 = arith.constant 16 : i32
    %6 = tpu.dynamic_rotate %1 by %c16_i32 dim 1 : vector<8x512xf32>, i32 -> vector<8x512xf32>
    %c8 = arith.constant 8 : index
    %c0_6 = arith.constant 0 : index
    %7 = vector.load %arg6[%c8, %c0_6] : memref<72x512xf32, #tpu.memory_space<vmem>>, vector<8x512xf32>
    %8 = arith.mulf %6, %7 : vector<8x512xf32>
    %c8_7 = arith.constant 8 : index
    %c0_8 = arith.constant 0 : index
    %9 = vector.load %arg8[%c8_7, %c0_8] : memref<72x512xf32, #tpu.memory_space<vmem>>, vector<8x512xf32>
    tpu.vector_store %arg8[%c8_7, %c0_8], %8 {strides = array<i32>} : memref<72x512xf32, #tpu.memory_space<vmem>>, vector<8x512xf32>,
    %c15_i32 = arith.constant 15 : i32
    %10 = tpu.dynamic_rotate %1 by %c15_i32 dim 1 : vector<8x512xf32>, i32 -> vector<8x512xf32>
    %c16 = arith.constant 16 : index
    %c0_9 = arith.constant 0 : index
    %11 = vector.load %arg6[%c16, %c0_9] : memref<72x512xf32, #tpu.memory_space<vmem>>, vector<8x512xf32>
    %12 = arith.mulf %10, %11 : vector<8x512xf32>
    %c16_10 = arith.constant 16 : index
    %c0_11 = arith.constant 0 : index
    %13 = vector.load %arg8[%c16_10, %c0_11] : memref<72x512xf32, #tpu.memory_space<vmem>>, vector<8x512xf32>
    tpu.vector_store %arg8[%c16_10, %c0_11], %12 {strides = array<i32>} : memref<72x512xf32, #tpu.memory_space<vmem>>, vector<8x512xf32>,
    %c1_i32 = arith.constant 1 : i32
    %14 = tpu.dynamic_rotate %1 by %c1_i32 dim 1 : vector<8x512xf32>, i32 -> vector<8x512xf32>
    %c24 = arith.constant 24 : index
    %c0_12 = arith.constant 0 : index
    %15 = vector.load %arg6[%c24, %c0_12] : memref<72x512xf32, #tpu.memory_space<vmem>>, vector<8x512xf32>
    %16 = arith.mulf %14, %15 : vector<8x512xf32>
    %c24_13 = arith.constant 24 : index
    %c0_14 = arith.constant 0 : index
    %17 = vector.load %arg8[%c24_13, %c0_14] : memref<72x512xf32, #tpu.memory_space<vmem>>, vector<8x512xf32>
    tpu.vector_store %arg8[%c24_13, %c0_14], %16 {strides = array<i32>} : memref<72x512xf32, #tpu.memory_space<vmem>>, vector<8x512xf32>,
    %c32 = arith.constant 32 : index
    %c0_15 = arith.constant 0 : index
    %18 = vector.load %arg8[%c32, %c0_15] : memref<72x512xf32, #tpu.memory_space<vmem>>, vector<8x512xf32>
    tpu.vector_store %arg8[%c32, %c0_15], %1 {strides = array<i32>} : memref<72x512xf32, #tpu.memory_space<vmem>>, vector<8x512xf32>,
    %c511_i32 = arith.constant 511 : i32
    %19 = tpu.dynamic_rotate %1 by %c511_i32 dim 1 : vector<8x512xf32>, i32 -> vector<8x512xf32>
    %c40 = arith.constant 40 : index
    %c0_16 = arith.constant 0 : index
    %20 = vector.load %arg6[%c40, %c0_16] : memref<72x512xf32, #tpu.memory_space<vmem>>, vector<8x512xf32>
    %21 = arith.mulf %19, %20 : vector<8x512xf32>
    %c40_17 = arith.constant 40 : index
    %c0_18 = arith.constant 0 : index
    %22 = vector.load %arg8[%c40_17, %c0_18] : memref<72x512xf32, #tpu.memory_space<vmem>>, vector<8x512xf32>
    tpu.vector_store %arg8[%c40_17, %c0_18], %21 {strides = array<i32>} : memref<72x512xf32, #tpu.memory_space<vmem>>, vector<8x512xf32>,
    %c497_i32 = arith.constant 497 : i32
    %23 = tpu.dynamic_rotate %1 by %c497_i32 dim 1 : vector<8x512xf32>, i32 -> vector<8x512xf32>
    %c48 = arith.constant 48 : index
    %c0_19 = arith.constant 0 : index
    %24 = vector.load %arg6[%c48, %c0_19] : memref<72x512xf32, #tpu.memory_space<vmem>>, vector<8x512xf32>
    %25 = arith.mulf %23, %24 : vector<8x512xf32>
    %c48_20 = arith.constant 48 : index
    %c0_21 = arith.constant 0 : index
    %26 = vector.load %arg8[%c48_20, %c0_21] : memref<72x512xf32, #tpu.memory_space<vmem>>, vector<8x512xf32>
    tpu.vector_store %arg8[%c48_20, %c0_21], %25 {strides = array<i32>} : memref<72x512xf32, #tpu.memory_space<vmem>>, vector<8x512xf32>,
    %c496_i32 = arith.constant 496 : i32
    %27 = tpu.dynamic_rotate %1 by %c496_i32 dim 1 : vector<8x512xf32>, i32 -> vector<8x512xf32>
    %c56 = arith.constant 56 : index
    %c0_22 = arith.constant 0 : index
    %28 = vector.load %arg6[%c56, %c0_22] : memref<72x512xf32, #tpu.memory_space<vmem>>, vector<8x512xf32>
    %29 = arith.mulf %27, %28 : vector<8x512xf32>
    %c56_23 = arith.constant 56 : index
    %c0_24 = arith.constant 0 : index
    %30 = vector.load %arg8[%c56_23, %c0_24] : memref<72x512xf32, #tpu.memory_space<vmem>>, vector<8x512xf32>
    tpu.vector_store %arg8[%c56_23, %c0_24], %29 {strides = array<i32>} : memref<72x512xf32, #tpu.memory_space<vmem>>, vector<8x512xf32>,
    %c495_i32 = arith.constant 495 : i32
    %31 = tpu.dynamic_rotate %1 by %c495_i32 dim 1 : vector<8x512xf32>, i32 -> vector<8x512xf32>
    %c64 = arith.constant 64 : index
    %c0_25 = arith.constant 0 : index
    %32 = vector.load %arg6[%c64, %c0_25] : memref<72x512xf32, #tpu.memory_space<vmem>>, vector<8x512xf32>
    %33 = arith.mulf %31, %32 : vector<8x512xf32>
    %c64_26 = arith.constant 64 : index
    %c0_27 = arith.constant 0 : index
    %34 = vector.load %arg8[%c64_26, %c0_27] : memref<72x512xf32, #tpu.memory_space<vmem>>, vector<8x512xf32>
    tpu.vector_store %arg8[%c64_26, %c0_27], %33 {strides = array<i32>} : memref<72x512xf32, #tpu.memory_space<vmem>>, vector<8x512xf32>,
    %c0_28 = arith.constant 0 : index
    %c0_29 = arith.constant 0 : index
    %35 = vector.load %arg2[%c0_28, %c0_29] : memref<8x72xf32, #tpu.memory_space<vmem>>, vector<8x72xf32>
    %c0_30 = arith.constant 0 : index
    %c0_31 = arith.constant 0 : index
    %36 = vector.load %arg8[%c0_30, %c0_31] : memref<72x512xf32, #tpu.memory_space<vmem>>, vector<72x512xf32>
    %cst = arith.constant dense<0.000000e+00> : vector<8x512xf32>
    %37 = tpu.matmul %35, %36, %cst {dimension_numbers = #tpu.dot_dimension_numbers<[1], [0], [0], [1], [0, 0, 1, 1], [], []>} : vector<8x72xf32>, vector<72x512xf32>, vector<8x512xf32> -> vector<8x512xf32>
    %c0_32 = arith.constant 0 : index
    %c0_33 = arith.constant 0 : index
    %38 = vector.load %arg3[%c0_32, %c0_33] : memref<8x1xf32, #tpu.memory_space<vmem>>, vector<8x1xf32>
    %39 = vector.broadcast %38 : vector<8x1xf32> to vector<8x512xf32>
    %40 = arith.addf %37, %39 : vector<8x512xf32>
    %cst_34 = arith.constant 0.000000e+00 : f32
    %41 = vector.broadcast %cst_34 : f32 to vector<8x512xf32>
    %42 = arith.maximumf %40, %41 : vector<8x512xf32>
    %c17_i32_35 = arith.constant 17 : i32
    %43 = tpu.dynamic_rotate %42 by %c17_i32_35 dim 1 : vector<8x512xf32>, i32 -> vector<8x512xf32>
    %c0_36 = arith.constant 0 : index
    %c0_37 = arith.constant 0 : index
    %44 = vector.load %arg6[%c0_36, %c0_37] : memref<72x512xf32, #tpu.memory_space<vmem>>, vector<8x512xf32>
    %45 = arith.mulf %43, %44 : vector<8x512xf32>
    %c0_38 = arith.constant 0 : index
    %c0_39 = arith.constant 0 : index
    %46 = vector.load %arg8[%c0_38, %c0_39] : memref<72x512xf32, #tpu.memory_space<vmem>>, vector<8x512xf32>
    tpu.vector_store %arg8[%c0_38, %c0_39], %45 {strides = array<i32>} : memref<72x512xf32, #tpu.memory_space<vmem>>, vector<8x512xf32>,
    %c16_i32_40 = arith.constant 16 : i32
    %47 = tpu.dynamic_rotate %42 by %c16_i32_40 dim 1 : vector<8x512xf32>, i32 -> vector<8x512xf32>
    %c8_41 = arith.constant 8 : index
    %c0_42 = arith.constant 0 : index
    %48 = vector.load %arg6[%c8_41, %c0_42] : memref<72x512xf32, #tpu.memory_space<vmem>>, vector<8x512xf32>
    %49 = arith.mulf %47, %48 : vector<8x512xf32>
    %c8_43 = arith.constant 8 : index
    %c0_44 = arith.constant 0 : index
    %50 = vector.load %arg8[%c8_43, %c0_44] : memref<72x512xf32, #tpu.memory_space<vmem>>, vector<8x512xf32>
    tpu.vector_store %arg8[%c8_43, %c0_44], %49 {strides = array<i32>} : memref<72x512xf32, #tpu.memory_space<vmem>>, vector<8x512xf32>,
    %c15_i32_45 = arith.constant 15 : i32
    %51 = tpu.dynamic_rotate %42 by %c15_i32_45 dim 1 : vector<8x512xf32>, i32 -> vector<8x512xf32>
    %c16_46 = arith.constant 16 : index
    %c0_47 = arith.constant 0 : index
    %52 = vector.load %arg6[%c16_46, %c0_47] : memref<72x512xf32, #tpu.memory_space<vmem>>, vector<8x512xf32>
    %53 = arith.mulf %51, %52 : vector<8x512xf32>
    %c16_48 = arith.constant 16 : index
    %c0_49 = arith.constant 0 : index
    %54 = vector.load %arg8[%c16_48, %c0_49] : memref<72x512xf32, #tpu.memory_space<vmem>>, vector<8x512xf32>
    tpu.vector_store %arg8[%c16_48, %c0_49], %53 {strides = array<i32>} : memref<72x512xf32, #tpu.memory_space<vmem>>, vector<8x512xf32>,
    %c1_i32_50 = arith.constant 1 : i32
    %55 = tpu.dynamic_rotate %42 by %c1_i32_50 dim 1 : vector<8x512xf32>, i32 -> vector<8x512xf32>
    %c24_51 = arith.constant 24 : index
    %c0_52 = arith.constant 0 : index
    %56 = vector.load %arg6[%c24_51, %c0_52] : memref<72x512xf32, #tpu.memory_space<vmem>>, vector<8x512xf32>
    %57 = arith.mulf %55, %56 : vector<8x512xf32>
    %c24_53 = arith.constant 24 : index
    %c0_54 = arith.constant 0 : index
    %58 = vector.load %arg8[%c24_53, %c0_54] : memref<72x512xf32, #tpu.memory_space<vmem>>, vector<8x512xf32>
    tpu.vector_store %arg8[%c24_53, %c0_54], %57 {strides = array<i32>} : memref<72x512xf32, #tpu.memory_space<vmem>>, vector<8x512xf32>,
    %c32_55 = arith.constant 32 : index
    %c0_56 = arith.constant 0 : index
    %59 = vector.load %arg8[%c32_55, %c0_56] : memref<72x512xf32, #tpu.memory_space<vmem>>, vector<8x512xf32>
    tpu.vector_store %arg8[%c32_55, %c0_56], %42 {strides = array<i32>} : memref<72x512xf32, #tpu.memory_space<vmem>>, vector<8x512xf32>,
    %c511_i32_57 = arith.constant 511 : i32
    %60 = tpu.dynamic_rotate %42 by %c511_i32_57 dim 1 : vector<8x512xf32>, i32 -> vector<8x512xf32>
    %c40_58 = arith.constant 40 : index
    %c0_59 = arith.constant 0 : index
    %61 = vector.load %arg6[%c40_58, %c0_59] : memref<72x512xf32, #tpu.memory_space<vmem>>, vector<8x512xf32>
    %62 = arith.mulf %60, %61 : vector<8x512xf32>
    %c40_60 = arith.constant 40 : index
    %c0_61 = arith.constant 0 : index
    %63 = vector.load %arg8[%c40_60, %c0_61] : memref<72x512xf32, #tpu.memory_space<vmem>>, vector<8x512xf32>
    tpu.vector_store %arg8[%c40_60, %c0_61], %62 {strides = array<i32>} : memref<72x512xf32, #tpu.memory_space<vmem>>, vector<8x512xf32>,
    %c497_i32_62 = arith.constant 497 : i32
    %64 = tpu.dynamic_rotate %42 by %c497_i32_62 dim 1 : vector<8x512xf32>, i32 -> vector<8x512xf32>
    %c48_63 = arith.constant 48 : index
    %c0_64 = arith.constant 0 : index
    %65 = vector.load %arg6[%c48_63, %c0_64] : memref<72x512xf32, #tpu.memory_space<vmem>>, vector<8x512xf32>
    %66 = arith.mulf %64, %65 : vector<8x512xf32>
    %c48_65 = arith.constant 48 : index
    %c0_66 = arith.constant 0 : index
    %67 = vector.load %arg8[%c48_65, %c0_66] : memref<72x512xf32, #tpu.memory_space<vmem>>, vector<8x512xf32>
    tpu.vector_store %arg8[%c48_65, %c0_66], %66 {strides = array<i32>} : memref<72x512xf32, #tpu.memory_space<vmem>>, vector<8x512xf32>,
    %c496_i32_67 = arith.constant 496 : i32
    %68 = tpu.dynamic_rotate %42 by %c496_i32_67 dim 1 : vector<8x512xf32>, i32 -> vector<8x512xf32>
    %c56_68 = arith.constant 56 : index
    %c0_69 = arith.constant 0 : index
    %69 = vector.load %arg6[%c56_68, %c0_69] : memref<72x512xf32, #tpu.memory_space<vmem>>, vector<8x512xf32>
    %70 = arith.mulf %68, %69 : vector<8x512xf32>
    %c56_70 = arith.constant 56 : index
    %c0_71 = arith.constant 0 : index
    %71 = vector.load %arg8[%c56_70, %c0_71] : memref<72x512xf32, #tpu.memory_space<vmem>>, vector<8x512xf32>
    tpu.vector_store %arg8[%c56_70, %c0_71], %70 {strides = array<i32>} : memref<72x512xf32, #tpu.memory_space<vmem>>, vector<8x512xf32>,
    %c495_i32_72 = arith.constant 495 : i32
    %72 = tpu.dynamic_rotate %42 by %c495_i32_72 dim 1 : vector<8x512xf32>, i32 -> vector<8x512xf32>
    %c64_73 = arith.constant 64 : index
    %c0_74 = arith.constant 0 : index
    %73 = vector.load %arg6[%c64_73, %c0_74] : memref<72x512xf32, #tpu.memory_space<vmem>>, vector<8x512xf32>
    %74 = arith.mulf %72, %73 : vector<8x512xf32>
    %c64_75 = arith.constant 64 : index
    %c0_76 = arith.constant 0 : index
    %75 = vector.load %arg8[%c64_75, %c0_76] : memref<72x512xf32, #tpu.memory_space<vmem>>, vector<8x512xf32>
    tpu.vector_store %arg8[%c64_75, %c0_76], %74 {strides = array<i32>} : memref<72x512xf32, #tpu.memory_space<vmem>>, vector<8x512xf32>,
    %c0_77 = arith.constant 0 : index
    %c0_78 = arith.constant 0 : index
    %76 = vector.load %arg4[%c0_77, %c0_78] : memref<8x72xf32, #tpu.memory_space<vmem>>, vector<8x72xf32>
    %c0_79 = arith.constant 0 : index
    %c0_80 = arith.constant 0 : index
    %77 = vector.load %arg8[%c0_79, %c0_80] : memref<72x512xf32, #tpu.memory_space<vmem>>, vector<72x512xf32>
    %cst_81 = arith.constant dense<0.000000e+00> : vector<8x512xf32>
    %78 = tpu.matmul %76, %77, %cst_81 {dimension_numbers = #tpu.dot_dimension_numbers<[1], [0], [0], [1], [0, 0, 1, 1], [], []>} : vector<8x72xf32>, vector<72x512xf32>, vector<8x512xf32> -> vector<8x512xf32>
    %c0_82 = arith.constant 0 : index
    %c0_83 = arith.constant 0 : index
    %79 = vector.load %arg5[%c0_82, %c0_83] : memref<8x1xf32, #tpu.memory_space<vmem>>, vector<8x1xf32>
    %80 = vector.broadcast %79 : vector<8x1xf32> to vector<8x512xf32>
    %81 = arith.addf %78, %80 : vector<8x512xf32>
    %cst_84 = arith.constant 0.000000e+00 : f32
    %82 = vector.broadcast %cst_84 : f32 to vector<8x512xf32>
    %83 = arith.maximumf %81, %82 : vector<8x512xf32>
    %84 = vector.extract_strided_slice %42 {offsets = [0, 0], sizes = [8, 256], strides = [1, 1]} : vector<8x512xf32> to vector<8x256xf32>
    %85 = vector.extract_strided_slice %42 {offsets = [0, 256], sizes = [8, 256], strides = [1, 1]} : vector<8x512xf32> to vector<8x256xf32>
    %86 = arith.subf %84, %85 : vector<8x256xf32>
    %87 = math.absf %86 : vector<8x256xf32>
    %cst_85 = arith.constant 1.000000e+00 : f32
    %88 = vector.broadcast %cst_85 : f32 to vector<8x256xf32>
    %89 = arith.cmpf olt, %87, %88 : vector<8x256xf32>
    %cst_86 = arith.constant 5.000000e-01 : f32
    %90 = vector.broadcast %cst_86 : f32 to vector<8x256xf32>
    %91 = arith.mulf %90, %86 : vector<8x256xf32>
    %92 = arith.mulf %91, %86 : vector<8x256xf32>
    %cst_87 = arith.constant 5.000000e-01 : f32
    %93 = vector.broadcast %cst_87 : f32 to vector<8x256xf32>
    %94 = arith.subf %87, %93 : vector<8x256xf32>
    %95 = arith.select %89, %92, %94 : vector<8x256xi1>, vector<8x256xf32>
    %cst_88 = arith.constant dense<0.000000e+00> : vector<256xf32>
    %96 = vector.multi_reduction <add>, %95, %cst_88 [0] : vector<8x256xf32> to vector<256xf32>
    %97 = vector.shape_cast %96 : vector<256xf32> to vector<1x256xf32>
    %c0_89 = arith.constant 0 : index
    %c0_90 = arith.constant 0 : index
    %c0_91 = arith.constant 0 : index
    %98 = vector.load %arg7[%c0_89, %c0_90, %c0_91] : memref<1x2x256xf32, #tpu.memory_space<vmem>>, vector<1x1x256xf32>
    %99 = vector.shape_cast %98 : vector<1x1x256xf32> to vector<1x256xf32>
    %100 = vector.shape_cast %97 : vector<1x256xf32> to vector<1x1x256xf32>
    tpu.vector_store %arg7[%c0_89, %c0_90, %c0_91], %100 {strides = array<i32>} : memref<1x2x256xf32, #tpu.memory_space<vmem>>, vector<1x1x256xf32>,
    %101 = vector.extract_strided_slice %83 {offsets = [0, 0], sizes = [8, 256], strides = [1, 1]} : vector<8x512xf32> to vector<8x256xf32>
    %102 = vector.extract_strided_slice %83 {offsets = [0, 256], sizes = [8, 256], strides = [1, 1]} : vector<8x512xf32> to vector<8x256xf32>
    %103 = arith.subf %101, %102 : vector<8x256xf32>
    %104 = math.absf %103 : vector<8x256xf32>
    %cst_92 = arith.constant 1.000000e+00 : f32
    %105 = vector.broadcast %cst_92 : f32 to vector<8x256xf32>
    %106 = arith.cmpf olt, %104, %105 : vector<8x256xf32>
    %cst_93 = arith.constant 5.000000e-01 : f32
    %107 = vector.broadcast %cst_93 : f32 to vector<8x256xf32>
    %108 = arith.mulf %107, %103 : vector<8x256xf32>
    %109 = arith.mulf %108, %103 : vector<8x256xf32>
    %cst_94 = arith.constant 5.000000e-01 : f32
    %110 = vector.broadcast %cst_94 : f32 to vector<8x256xf32>
    %111 = arith.subf %104, %110 : vector<8x256xf32>
    %112 = arith.select %106, %109, %111 : vector<8x256xi1>, vector<8x256xf32>
    %cst_95 = arith.constant dense<0.000000e+00> : vector<256xf32>
    %113 = vector.multi_reduction <add>, %112, %cst_95 [0] : vector<8x256xf32> to vector<256xf32>
    %114 = vector.shape_cast %113 : vector<256xf32> to vector<1x256xf32>
    %c0_96 = arith.constant 0 : index
    %c1 = arith.constant 1 : index
    %c0_97 = arith.constant 0 : index
    %115 = vector.load %arg7[%c0_96, %c1, %c0_97] : memref<1x2x256xf32, #tpu.memory_space<vmem>>, vector<1x1x256xf32>
    %116 = vector.shape_cast %115 : vector<1x1x256xf32> to vector<1x256xf32>
    %117 = vector.shape_cast %114 : vector<1x256xf32> to vector<1x1x256xf32>
    tpu.vector_store %arg7[%c0_96, %c1, %c0_97], %117 {strides = array<i32>} : memref<1x2x256xf32, #tpu.memory_space<vmem>>, vector<1x1x256xf32>,
    return
  }
  func.func @transform_0(%arg0: i32) -> (i32, i32, i32) {
    %c0_i32 = arith.constant 0 : i32
    %c0_i32_0 = arith.constant 0 : i32
    %c0_i32_1 = arith.constant 0 : i32
    return %arg0, %c0_i32, %c0_i32_0 : i32, i32, i32
  }
  func.func @transform_1(%arg0: i32) -> (i32, i32) {
    %c0_i32 = arith.constant 0 : i32
    %c0_i32_0 = arith.constant 0 : i32
    %c0_i32_1 = arith.constant 0 : i32
    return %c0_i32, %c0_i32_0 : i32, i32
  }
  func.func @transform_2(%arg0: i32) -> (i32, i32) {
    %c0_i32 = arith.constant 0 : i32
    %c0_i32_0 = arith.constant 0 : i32
    %c0_i32_1 = arith.constant 0 : i32
    return %c0_i32, %c0_i32_0 : i32, i32
  }
  func.func @transform_3(%arg0: i32) -> (i32, i32) {
    %c0_i32 = arith.constant 0 : i32
    %c0_i32_0 = arith.constant 0 : i32
    %c0_i32_1 = arith.constant 0 : i32
    return %c0_i32, %c0_i32_0 : i32, i32
  }
  func.func @transform_4(%arg0: i32) -> (i32, i32) {
    %c0_i32 = arith.constant 0 : i32
    %c0_i32_0 = arith.constant 0 : i32
    %c0_i32_1 = arith.constant 0 : i32
    return %c0_i32, %c0_i32_0 : i32, i32
  }
  func.func @transform_5(%arg0: i32) -> (i32, i32) {
    %c0_i32 = arith.constant 0 : i32
    %c0_i32_0 = arith.constant 0 : i32
    %c0_i32_1 = arith.constant 0 : i32
    return %c0_i32, %c0_i32_0 : i32, i32
  }
  func.func @transform_6(%arg0: i32) -> (i32, i32, i32) {
    %c0_i32 = arith.constant 0 : i32
    %c0_i32_0 = arith.constant 0 : i32
    %c0_i32_1 = arith.constant 0 : i32
    return %arg0, %c0_i32, %c0_i32_0 : i32, i32, i32
  }
}

</mosaic_0001>

<llo_original>
// kernel: submodel_forward.1
$region0: #{submodel_forward.1}
  #allocation0 [shape = 'u32[]', space=smem, size = 0x4, offset = 0x4, fixed_abs, tag = 'smem constant byte address 0x4 - core index']
  #allocation1 [shape = 'u32[72,128]{1,0:T(1,128)}', space=vmem, size = 0x9000, scoped, tag = 'internal scratch']
  #allocation2 [shape = 'f32[72,512]{1,0:T(8,128)}', space=vmem, size = 0x24000, scoped, tag = 'scratch operand']
  %s0 = inlined_call_operand.vmem [shape: f32[2,8,512], index: 0, kind: input, shape index: {}]
  %s1 = inlined_call_operand.vmem [shape: f32[8,72], index: 1, kind: input, shape index: {}]
  %s2 = inlined_call_operand.vmem [shape: f32[8,1], index: 2, kind: input, shape index: {}]
  %s3 = inlined_call_operand.vmem [shape: f32[8,72], index: 3, kind: input, shape index: {}]
  %s4 = inlined_call_operand.vmem [shape: f32[8,1], index: 4, kind: input, shape index: {}]
  %s5 = inlined_call_operand.vmem [shape: f32[72,512], index: 5, kind: input, shape index: {}]
  %s6 = inlined_call_operand.vmem [shape: f32[2,2,256], index: 6, kind: output, shape index: {}]
  %s7 = sld [smem:[#allocation0]]
  $region57: #{submodel_forward.1} parent=0
    _
  %s9 = ssub.s32 1, %s7
  %s10 = scalar_select 0, %s9, %s7
  loop: start=0, step=1, limit=4
  $region2: #{submodel_forward.1} parent=0 // loop_pre_header
    _
  $region3: #{submodel_forward.1} parent=0 // loop_header
    %s12 = sphi 0, %s16
    %p13 = scmp.ge.s32.totalorder %s12, 4
    %s22 = sphi 0, %s24
    %s25 = sphi 0, %s22
    %s26 = sphi 0, %s25
    %s42 = sphi 0, %s26
    %s46 = sphi 0, %s46
    %s48 = sphi 0, %s46
    %s49 = sphi 0, %s48
    %s63 = sphi 0, %s49
    %s67 = sphi 0, %s67
    %s69 = sphi 0, %s67
    %s70 = sphi 0, %s69
    %s84 = sphi 0, %s70
    %s88 = sphi 0, %s88
    %s90 = sphi 0, %s88
    %s91 = sphi 0, %s90
    %s105 = sphi 0, %s91
    %s109 = sphi 0, %s109
    %s111 = sphi 0, %s109
    %s112 = sphi 0, %s111
    %s126 = sphi 0, %s112
    %s130 = sphi 0, %s130
    %s132 = sphi 0, %s130
    %s133 = sphi 0, %s132
    %s147 = sphi 0, %s133
    %s153 = sphi 0, %s155
    %s156 = sphi 0, %s153
    %s157 = sphi 0, %s156
    %s173 = sphi 0, %s157
  $region4: #{submodel_forward.1} parent=0 // loop_header_branch
    %15 = sbr.rel (%p13) target = $region8
  $region5: #{submodel_forward.1} parent=0 // loop_body
    %s17 = ssub.s32 %s12, 1
    %s18 = ssub.s32 %s12, 2
    %s19 = sadd.s32 %s12, 1
    %s20 = ssub.s32 %s12, %s19
    %p21 = scmp.eq.s32.totalorder %s20, 0
    %s23 = sadd.s32 %s22, 1
    %s24 = scalar_select %p21, %s22, %s23
    %p27 = pneg %p21
    %p28 = scmp.eq.s32.totalorder %s12, 1
    %p29 = por %p27, %p28
    %p30 = scmp.ne.s32.totalorder %s22, %s25
    %p31 = scmp.eq.s32.totalorder %s12, 0
    %p32 = por %p30, %p31
    %p33 = scmp.ne.s32.totalorder %s22, %s25
    %p34 = scmp.eq.s32.totalorder %s17, 1
    %p35 = por %p33, %p34
    %p36 = scmp.ne.s32.totalorder %s25, %s26
    %p37 = scmp.eq.s32.totalorder %s17, 0
    %p38 = por %p36, %p37
    %p39 = scmp.ne.s32.totalorder %s25, %s26
    %p40 = scmp.eq.s32.totalorder %s18, 1
    %p41 = por %p39, %p40
    %p43 = scmp.ne.s32.totalorder %s26, %s42
    %p44 = scmp.eq.s32.totalorder %s18, 0
    %p45 = por %p43, %p44
    %s47 = sadd.s32 %s46, 1
    %p50 = scmp.eq.s32.totalorder %s12, 1
    %p51 = scmp.ne.s32.totalorder %s46, %s48
    %p52 = scmp.eq.s32.totalorder %s12, 0
    %p53 = por %p51, %p52
    %p54 = scmp.ne.s32.totalorder %s46, %s48
    %p55 = scmp.eq.s32.totalorder %s17, 1
    %p56 = por %p54, %p55
    %p57 = scmp.ne.s32.totalorder %s48, %s49
    %p58 = scmp.eq.s32.totalorder %s17, 0
    %p59 = por %p57, %p58
    %p60 = scmp.ne.s32.totalorder %s48, %s49
    %p61 = scmp.eq.s32.totalorder %s18, 1
    %p62 = por %p60, %p61
    %p64 = scmp.ne.s32.totalorder %s49, %s63
    %p65 = scmp.eq.s32.totalorder %s18, 0
    %p66 = por %p64, %p65
    %s68 = sadd.s32 %s67, 1
    %p71 = scmp.eq.s32.totalorder %s12, 1
    %p72 = scmp.ne.s32.totalorder %s67, %s69
    %p73 = scmp.eq.s32.totalorder %s12, 0
    %p74 = por %p72, %p73
    %p75 = scmp.ne.s32.totalorder %s67, %s69
    %p76 = scmp.eq.s32.totalorder %s17, 1
    %p77 = por %p75, %p76
    %p78 = scmp.ne.s32.totalorder %s69, %s70
    %p79 = scmp.eq.s32.totalorder %s17, 0
    %p80 = por %p78, %p79
    %p81 = scmp.ne.s32.totalorder %s69, %s70
    %p82 = scmp.eq.s32.totalorder %s18, 1
    %p83 = por %p81, %p82
    %p85 = scmp.ne.s32.totalorder %s70, %s84
    %p86 = scmp.eq.s32.totalorder %s18, 0
    %p87 = por %p85, %p86
    %s89 = sadd.s32 %s88, 1
    %p92 = scmp.eq.s32.totalorder %s12, 1
    %p93 = scmp.ne.s32.totalorder %s88, %s90
    %p94 = scmp.eq.s32.totalorder %s12, 0
    %p95 = por %p93, %p94
    %p96 = scmp.ne.s32.totalorder %s88, %s90
    %p97 = scmp.eq.s32.totalorder %s17, 1
    %p98 = por %p96, %p97
    %p99 = scmp.ne.s32.totalorder %s90, %s91
    %p100 = scmp.eq.s32.totalorder %s17, 0
    %p101 = por %p99, %p100
    %p102 = scmp.ne.s32.totalorder %s90, %s91
    %p103 = scmp.eq.s32.totalorder %s18, 1
    %p104 = por %p102, %p103
    %p106 = scmp.ne.s32.totalorder %s91, %s105
    %p107 = scmp.eq.s32.totalorder %s18, 0
    %p108 = por %p106, %p107
    %s110 = sadd.s32 %s109, 1
    %p113 = scmp.eq.s32.totalorder %s12, 1
    %p114 = scmp.ne.s32.totalorder %s109, %s111
    %p115 = scmp.eq.s32.totalorder %s12, 0
    %p116 = por %p114, %p115
    %p117 = scmp.ne.s32.totalorder %s109, %s111
    %p118 = scmp.eq.s32.totalorder %s17, 1
    %p119 = por %p117, %p118
    %p120 = scmp.ne.s32.totalorder %s111, %s112
    %p121 = scmp.eq.s32.totalorder %s17, 0
    %p122 = por %p120, %p121
    %p123 = scmp.ne.s32.totalorder %s111, %s112
    %p124 = scmp.eq.s32.totalorder %s18, 1
    %p125 = por %p123, %p124
    %p127 = scmp.ne.s32.totalorder %s112, %s126
    %p128 = scmp.eq.s32.totalorder %s18, 0
    %p129 = por %p127, %p128
    %s131 = sadd.s32 %s130, 1
    %p134 = scmp.eq.s32.totalorder %s12, 1
    %p135 = scmp.ne.s32.totalorder %s130, %s132
    %p136 = scmp.eq.s32.totalorder %s12, 0
    %p137 = por %p135, %p136
    %p138 = scmp.ne.s32.totalorder %s130, %s132
    %p139 = scmp.eq.s32.totalorder %s17, 1
    %p140 = por %p138, %p139
    %p141 = scmp.ne.s32.totalorder %s132, %s133
    %p142 = scmp.eq.s32.totalorder %s17, 0
    %p143 = por %p141, %p142
    %p144 = scmp.ne.s32.totalorder %s132, %s133
    %p145 = scmp.eq.s32.totalorder %s18, 1
    %p146 = por %p144, %p145
    %p148 = scmp.ne.s32.totalorder %s133, %s147
    %p149 = scmp.eq.s32.totalorder %s18, 0
    %p150 = por %p148, %p149
    %s151 = ssub.s32 %s12, %s19
    %p152 = scmp.eq.s32.totalorder %s151, 0
    %s154 = sadd.s32 %s153, 1
    %s155 = scalar_select %p152, %s153, %s154
    %p158 = pneg %p152
    %p159 = scmp.eq.s32.totalorder %s12, 1
    %p160 = por %p158, %p159
    %p161 = scmp.ne.s32.totalorder %s153, %s156
    %p162 = scmp.eq.s32.totalorder %s12, 0
    %p163 = por %p161, %p162
    %p164 = scmp.ne.s32.totalorder %s153, %s156
    %p165 = scmp.eq.s32.totalorder %s17, 1
    %p166 = por %p164, %p165
    %p167 = scmp.ne.s32.totalorder %s156, %s157
    %p168 = scmp.eq.s32.totalorder %s17, 0
    %p169 = por %p167, %p168
    %p170 = scmp.ne.s32.totalorder %s156, %s157
    %p171 = scmp.eq.s32.totalorder %s18, 1
    %p172 = por %p170, %p171
    %p174 = scmp.ne.s32.totalorder %s157, %s173
    %p175 = scmp.eq.s32.totalorder %s18, 0
    %p176 = por %p174, %p175
    %p177 = scmp.le.s32.totalorder 1, %s12
    %p178 = scmp.lt.s32.totalorder %s12, 3
    %p179 = pnand %p177, %p178
    %p180 = pneg %p179
    // Predicated region
    $region9: #{submodel_forward.1} parent=5 // pred_check
      _
    $region10: #{submodel_forward.1} parent=5 // pred_check_branch
      %182 = sbr.rel (%p179) target = $region12
    $region11: #{submodel_forward.1} parent=5 // pred_region
      %s183 = ssub.s32 %s12, 1
      // Predicated region
      $region13: #{submodel_forward.1} parent=11 // pred_check
        %p184 = pneg %p59
      $region14: #{submodel_forward.1} parent=11 // pred_check_branch
        %186 = sbr.rel (%p184) target = $region16
      $region15: #{submodel_forward.1} parent=11 // pred_region
        _
      $region16: #{submodel_forward.1} parent=11 // pred_fallthru
        _
      // Predicated region
      $region17: #{submodel_forward.1} parent=11 // pred_check
        %p187 = pneg %p80
      $region18: #{submodel_forward.1} parent=11 // pred_check_branch
        %189 = sbr.rel (%p187) target = $region20
      $region19: #{submodel_forward.1} parent=11 // pred_region
        _
      $region20: #{submodel_forward.1} parent=11 // pred_fallthru
        _
      // Predicated region
      $region21: #{submodel_forward.1} parent=11 // pred_check
        %p190 = pneg %p101
      $region22: #{submodel_forward.1} parent=11 // pred_check_branch
        %192 = sbr.rel (%p190) target = $region24
      $region23: #{submodel_forward.1} parent=11 // pred_region
        _
      $region24: #{submodel_forward.1} parent=11 // pred_fallthru
        _
      // Predicated region
      $region25: #{submodel_forward.1} parent=11 // pred_check
        %p193 = pneg %p122
      $region26: #{submodel_forward.1} parent=11 // pred_check_branch
        %195 = sbr.rel (%p193) target = $region28
      $region27: #{submodel_forward.1} parent=11 // pred_region
        _
      $region28: #{submodel_forward.1} parent=11 // pred_fallthru
        _
      // Predicated region
      $region29: #{submodel_forward.1} parent=11 // pred_check
        %p196 = pneg %p143
      $region30: #{submodel_forward.1} parent=11 // pred_check_branch
        %198 = sbr.rel (%p196) target = $region32
      $region31: #{submodel_forward.1} parent=11 // pred_region
        _
      $region32: #{submodel_forward.1} parent=11 // pred_fallthru
        _
    $region12: #{submodel_forward.1} parent=5 // pred_fallthru
      _
    %p199 = scmp.lt.s32.totalorder %s12, 2
    // Predicated region
    $region33: #{submodel_forward.1} parent=5 // pred_check
      %p200 = pneg %p199
    $region34: #{submodel_forward.1} parent=5 // pred_check_branch
      %202 = sbr.rel (%p200) target = $region36
    $region35: #{submodel_forward.1} parent=5 // pred_region
      // Predicated region
      $region37: #{submodel_forward.1} parent=35 // pred_check
        %p203 = pneg %p32
      $region38: #{submodel_forward.1} parent=35 // pred_check_branch
        %205 = sbr.rel (%p203) target = $region40
      $region39: #{submodel_forward.1} parent=35 // pred_region
        %p206 = scmp.lt.s32.totalorder %s12, 1
        %s207 = scalar_select %p206, %s12, 1
        %s208 = smul.addr %s207, 4
        %s209 = smul.addr %s208, 8
        %s210 = scalar_lea.vmem %s0, %s209
      $region40: #{submodel_forward.1} parent=35 // pred_fallthru
        _
    $region36: #{submodel_forward.1} parent=5 // pred_fallthru
      _
    %p211 = scmp.le.s32.totalorder 1, %s12
    %p212 = scmp.lt.s32.totalorder %s12, 3
    %p213 = pnand %p211, %p212
    %p214 = pneg %p213
    // Predicated region
    $region41: #{submodel_forward.1} parent=5 // pred_check
      _
    $region42: #{submodel_forward.1} parent=5 // pred_check_branch
      %216 = sbr.rel (%p213) target = $region44
    $region43: #{submodel_forward.1} parent=5 // pred_region
      %s217 = ssub.s32 %s12, 1
      %p218 = scmp.lt.s32.totalorder %s17, 1
      %s219 = scalar_select %p218, %s17, 1
      %s220 = smul.addr %s219, 4
      %s221 = smul.addr %s220, 8
      %s222 = scalar_lea.vmem %s0, %s221
      %p223 = pneg %p38
      %p224 = pneg %p35
      %p225 = pneg %p59
      %p226 = pneg %p56
      %p227 = pneg %p80
      %p228 = pneg %p77
      %p229 = pneg %p101
      %p230 = pneg %p98
      %p231 = pneg %p122
      %p232 = pneg %p119
      %p233 = pneg %p143
      %p234 = pneg %p140
      %p235 = pneg %p169
      %p236 = pneg %p166
      %p237 = scmp.lt.s32.totalorder %s17, 1
      %s238 = scalar_select %p237, %s17, 1
      %s239 = smul.addr %s238, 2
      %s240 = smul.addr %s239, 2
      %s241 = scalar_lea.vmem %s6, %s240
      %p242 = scmp.lt.s32.totalorder %s17, 1
      %s243 = scalar_select %p242, %s17, 1
      %s244 = smul.addr %s243, 4
      %s245 = smul.addr %s244, 8
      %s246 = scalar_lea.vmem %s0, %s245
      %p247 = scmp.lt.s32.totalorder %s17, 1
      %s248 = scalar_select %p247, %s17, 1
      %s249 = smul.addr %s248, 2
      %s250 = smul.addr %s249, 2
      %s251 = scalar_lea.vmem %s6, %s250
      %v252 = vld [vmem:[%s246] sm:$0xff]
      %v253 = vld [vmem:[%s246 + $0x8] sm:$0xff]
      %v254 = vld [vmem:[%s246 + $0x10] sm:$0xff]
      %v255 = vld [vmem:[%s246 + $0x18] sm:$0xff]
      %256 = vrot.lane.b32.xlu0 %v252, 17
      %v257 = vpop.permute.xlu0 %256
      %258 = vrot.lane.b32.xlu0 %v253, 17
      %v259 = vpop.permute.xlu0 %258
      %260 = vrot.lane.b32.xlu0 %v254, 17
      %v261 = vpop.permute.xlu0 %260
      %262 = vrot.lane.b32.xlu0 %v255, 17
      %v263 = vpop.permute.xlu0 %262
      %v264 = vlaneseq
      %v265 = vand.u32 %v264, 127
      %vm266 = vcmp.lt.s32.totalorder %v265, 17
      %v267 = vsel %vm266, %v261, %v263
      %v268 = vsel %vm266, %v259, %v261
      %v269 = vsel %vm266, %v257, %v259
      %v270 = vsel %vm266, %v263, %v257
      %v271 = vld [vmem:[%s5] sm:$0xff]
      %v272 = vld [vmem:[%s5 + $0x8] sm:$0xff]
      %v273 = vld [vmem:[%s5 + $0x10] sm:$0xff]
      %v274 = vld [vmem:[%s5 + $0x18] sm:$0xff]
      %v275 = vmul.f32 %v270, %v271
      %v276 = vmul.f32 %v269, %v272
      %v277 = vmul.f32 %v268, %v273
      %v278 = vmul.f32 %v267, %v274
      %279 = vst [vmem:[#allocation2] sm:$0xff] %v275
      %280 = vst [vmem:[#allocation2 + $0x8] sm:$0xff] %v276
      %281 = vst [vmem:[#allocation2 + $0x10] sm:$0xff] %v277
      %282 = vst [vmem:[#allocation2 + $0x18] sm:$0xff] %v278
      %283 = vrot.lane.b32.xlu0 %v252, 16
      %v284 = vpop.permute.xlu0 %283
      %285 = vrot.lane.b32.xlu0 %v253, 16
      %v286 = vpop.permute.xlu0 %285
      %287 = vrot.lane.b32.xlu0 %v254, 16
      %v288 = vpop.permute.xlu0 %287
      %289 = vrot.lane.b32.xlu0 %v255, 16
      %v290 = vpop.permute.xlu0 %289
      %vm291 = vcmp.lt.s32.totalorder %v265, 16
      %v292 = vsel %vm291, %v288, %v290
      %v293 = vsel %vm291, %v286, %v288
      %v294 = vsel %vm291, %v284, %v286
      %v295 = vsel %vm291, %v290, %v284
      %v296 = vld [vmem:[%s5 + $0x20] sm:$0xff]
      %v297 = vld [vmem:[%s5 + $0x28] sm:$0xff]
      %v298 = vld [vmem:[%s5 + $0x30] sm:$0xff]
      %v299 = vld [vmem:[%s5 + $0x38] sm:$0xff]
      %v300 = vmul.f32 %v295, %v296
      %v301 = vmul.f32 %v294, %v297
      %v302 = vmul.f32 %v293, %v298
      %v303 = vmul.f32 %v292, %v299
      %304 = vst [vmem:[#allocation2 + $0x20] sm:$0xff] %v300
      %305 = vst [vmem:[#allocation2 + $0x28] sm:$0xff] %v301
      %306 = vst [vmem:[#allocation2 + $0x30] sm:$0xff] %v302
      %307 = vst [vmem:[#allocation2 + $0x38] sm:$0xff] %v303
      %308 = vrot.lane.b32.xlu0 %v252, 15
      %v309 = vpop.permute.xlu0 %308
      %310 = vrot.lane.b32.xlu0 %v253, 15
      %v311 = vpop.permute.xlu0 %310
      %312 = vrot.lane.b32.xlu0 %v254, 15
      %v313 = vpop.permute.xlu0 %312
      %314 = vrot.lane.b32.xlu0 %v255, 15
      %v315 = vpop.permute.xlu0 %314
      %vm316 = vcmp.lt.s32.totalorder %v265, 15
      %v317 = vsel %vm316, %v313, %v315
      %v318 = vsel %vm316, %v311, %v313
      %v319 = vsel %vm316, %v309, %v311
      %v320 = vsel %vm316, %v315, %v309
      %v321 = vld [vmem:[%s5 + $0x40] sm:$0xff]
      %v322 = vld [vmem:[%s5 + $0x48] sm:$0xff]
      %v323 = vld [vmem:[%s5 + $0x50] sm:$0xff]
      %v324 = vld [vmem:[%s5 + $0x58] sm:$0xff]
      %v325 = vmul.f32 %v320, %v321
      %v326 = vmul.f32 %v319, %v322
      %v327 = vmul.f32 %v318, %v323
      %v328 = vmul.f32 %v317, %v324
      %329 = vst [vmem:[#allocation2 + $0x40] sm:$0xff] %v325
      %330 = vst [vmem:[#allocation2 + $0x48] sm:$0xff] %v326
      %331 = vst [vmem:[#allocation2 + $0x50] sm:$0xff] %v327
      %332 = vst [vmem:[#allocation2 + $0x58] sm:$0xff] %v328
      %333 = vrot.lane.b32.xlu0 %v252, 1
      %v334 = vpop.permute.xlu0 %333
      %335 = vrot.lane.b32.xlu0 %v253, 1
      %v336 = vpop.permute.xlu0 %335
      %337 = vrot.lane.b32.xlu0 %v254, 1
      %v338 = vpop.permute.xlu0 %337
      %339 = vrot.lane.b32.xlu0 %v255, 1
      %v340 = vpop.permute.xlu0 %339
      %vm341 = vcmp.lt.s32.totalorder %v265, 1
      %v342 = vsel %vm341, %v338, %v340
      %v343 = vsel %vm341, %v336, %v338
      %v344 = vsel %vm341, %v334, %v336
      %v345 = vsel %vm341, %v340, %v334
      %v346 = vld [vmem:[%s5 + $0x60] sm:$0xff]
      %v347 = vld [vmem:[%s5 + $0x68] sm:$0xff]
      %v348 = vld [vmem:[%s5 + $0x70] sm:$0xff]
      %v349 = vld [vmem:[%s5 + $0x78] sm:$0xff]
      %v350 = vmul.f32 %v345, %v346
      %v351 = vmul.f32 %v344, %v347
      %v352 = vmul.f32 %v343, %v348
      %v353 = vmul.f32 %v342, %v349
      %354 = vst [vmem:[#allocation2 + $0x60] sm:$0xff] %v350
      %355 = vst [vmem:[#allocation2 + $0x68] sm:$0xff] %v351
      %356 = vst [vmem:[#allocation2 + $0x70] sm:$0xff] %v352
      %357 = vst [vmem:[#allocation2 + $0x78] sm:$0xff] %v353
      %358 = vst [vmem:[#allocation2 + $0x80] sm:$0xff] %v252
      %359 = vst [vmem:[#allocation2 + $0x88] sm:$0xff] %v253
      %360 = vst [vmem:[#allocation2 + $0x90] sm:$0xff] %v254
      %361 = vst [vmem:[#allocation2 + $0x98] sm:$0xff] %v255
      %362 = vrot.lane.b32.xlu0 %v252, 127
      %v363 = vpop.permute.xlu0 %362
      %364 = vrot.lane.b32.xlu0 %v253, 127
      %v365 = vpop.permute.xlu0 %364
      %366 = vrot.lane.b32.xlu0 %v254, 127
      %v367 = vpop.permute.xlu0 %366
      %368 = vrot.lane.b32.xlu0 %v255, 127
      %v369 = vpop.permute.xlu0 %368
      %vm370 = vcmp.lt.s32.totalorder %v265, 127
      %v371 = vsel %vm370, %v367, %v369
      %v372 = vsel %vm370, %v365, %v367
      %v373 = vsel %vm370, %v363, %v365
      %v374 = vsel %vm370, %v369, %v363
      %v375 = vld [vmem:[%s5 + $0xa0] sm:$0xff]
      %v376 = vld [vmem:[%s5 + $0xa8] sm:$0xff]
      %v377 = vld [vmem:[%s5 + $0xb0] sm:$0xff]
      %v378 = vld [vmem:[%s5 + $0xb8] sm:$0xff]
      %v379 = vmul.f32 %v373, %v375
      %v380 = vmul.f32 %v372, %v376
      %v381 = vmul.f32 %v371, %v377
      %v382 = vmul.f32 %v374, %v378
      %383 = vst [vmem:[#allocation2 + $0xa0] sm:$0xff] %v379
      %384 = vst [vmem:[#allocation2 + $0xa8] sm:$0xff] %v380
      %385 = vst [vmem:[#allocation2 + $0xb0] sm:$0xff] %v381
      %386 = vst [vmem:[#allocation2 + $0xb8] sm:$0xff] %v382
      %387 = vrot.lane.b32.xlu0 %v252, 113
      %v388 = vpop.permute.xlu0 %387
      %389 = vrot.lane.b32.xlu0 %v253, 113
      %v390 = vpop.permute.xlu0 %389
      %391 = vrot.lane.b32.xlu0 %v254, 113
      %v392 = vpop.permute.xlu0 %391
      %393 = vrot.lane.b32.xlu0 %v255, 113
      %v394 = vpop.permute.xlu0 %393
      %vm395 = vcmp.lt.s32.totalorder %v265, 113
      %v396 = vsel %vm395, %v392, %v394
      %v397 = vsel %vm395, %v390, %v392
      %v398 = vsel %vm395, %v388, %v390
      %v399 = vsel %vm395, %v394, %v388
      %v400 = vld [vmem:[%s5 + $0xc0] sm:$0xff]
      %v401 = vld [vmem:[%s5 + $0xc8] sm:$0xff]
      %v402 = vld [vmem:[%s5 + $0xd0] sm:$0xff]
      %v403 = vld [vmem:[%s5 + $0xd8] sm:$0xff]
      %v404 = vmul.f32 %v398, %v400
      %v405 = vmul.f32 %v397, %v401
      %v406 = vmul.f32 %v396, %v402
      %v407 = vmul.f32 %v399, %v403
      %408 = vst [vmem:[#allocation2 + $0xc0] sm:$0xff] %v404
      %409 = vst [vmem:[#allocation2 + $0xc8] sm:$0xff] %v405
      %410 = vst [vmem:[#allocation2 + $0xd0] sm:$0xff] %v406
      %411 = vst [vmem:[#allocation2 + $0xd8] sm:$0xff] %v407
      %412 = vrot.lane.b32.xlu0 %v252, 112
      %v413 = vpop.permute.xlu0 %412
      %414 = vrot.lane.b32.xlu0 %v253, 112
      %v415 = vpop.permute.xlu0 %414
      %416 = vrot.lane.b32.xlu0 %v254, 112
      %v417 = vpop.permute.xlu0 %416
      %418 = vrot.lane.b32.xlu0 %v255, 112
      %v419 = vpop.permute.xlu0 %418
      %vm420 = vcmp.lt.s32.totalorder %v265, 112
      %v421 = vsel %vm420, %v417, %v419
      %v422 = vsel %vm420, %v415, %v417
      %v423 = vsel %vm420, %v413, %v415
      %v424 = vsel %vm420, %v419, %v413
      %v425 = vld [vmem:[%s5 + $0xe0] sm:$0xff]
      %v426 = vld [vmem:[%s5 + $0xe8] sm:$0xff]
      %v427 = vld [vmem:[%s5 + $0xf0] sm:$0xff]
      %v428 = vld [vmem:[%s5 + $0xf8] sm:$0xff]
      %v429 = vmul.f32 %v423, %v425
      %v430 = vmul.f32 %v422, %v426
      %v431 = vmul.f32 %v421, %v427
      %v432 = vmul.f32 %v424, %v428
      %433 = vst [vmem:[#allocation2 + $0xe0] sm:$0xff] %v429
      %434 = vst [vmem:[#allocation2 + $0xe8] sm:$0xff] %v430
      %435 = vst [vmem:[#allocation2 + $0xf0] sm:$0xff] %v431
      %436 = vst [vmem:[#allocation2 + $0xf8] sm:$0xff] %v432
      %437 = vrot.lane.b32.xlu0 %v252, 111
      %v438 = vpop.permute.xlu0 %437
      %439 = vrot.lane.b32.xlu0 %v253, 111
      %v440 = vpop.permute.xlu0 %439
      %441 = vrot.lane.b32.xlu0 %v254, 111
      %v442 = vpop.permute.xlu0 %441
      %443 = vrot.lane.b32.xlu0 %v255, 111
      %v444 = vpop.permute.xlu0 %443
      %vm445 = vcmp.lt.s32.totalorder %v265, 111
      %v446 = vsel %vm445, %v442, %v444
      %v447 = vsel %vm445, %v440, %v442
      %v448 = vsel %vm445, %v438, %v440
      %v449 = vsel %vm445, %v444, %v438
      %v450 = vld [vmem:[%s5 + $0x100] sm:$0xff]
      %v451 = vld [vmem:[%s5 + $0x108] sm:$0xff]
      %v452 = vld [vmem:[%s5 + $0x110] sm:$0xff]
      %v453 = vld [vmem:[%s5 + $0x118] sm:$0xff]
      %v454 = vmul.f32 %v448, %v450
      %v455 = vmul.f32 %v447, %v451
      %v456 = vmul.f32 %v446, %v452
      %v457 = vmul.f32 %v449, %v453
      %458 = vst [vmem:[#allocation2 + $0x100] sm:$0xff] %v454
      %459 = vst [vmem:[#allocation2 + $0x108] sm:$0xff] %v455
      %460 = vst [vmem:[#allocation2 + $0x110] sm:$0xff] %v456
      %461 = vst [vmem:[#allocation2 + $0x118] sm:$0xff] %v457
      %v462 = vld [vmem:[%s1] sm:$0xff]
      %v463 = vld [vmem:[#allocation2] sm:$0xff]
      %v464 = vld [vmem:[#allocation2 + $0x8] sm:$0xff]
      %v465 = vld [vmem:[#allocation2 + $0x10] sm:$0xff]
      %v466 = vld [vmem:[#allocation2 + $0x18] sm:$0xff]
      %v467 = vld [vmem:[#allocation2 + $0x20] sm:$0xff]
      %v468 = vld [vmem:[#allocation2 + $0x28] sm:$0xff]
      %v469 = vld [vmem:[#allocation2 + $0x30] sm:$0xff]
      %v470 = vld [vmem:[#allocation2 + $0x38] sm:$0xff]
      %v471 = vld [vmem:[#allocation2 + $0x40] sm:$0xff]
      %v472 = vld [vmem:[#allocation2 + $0x48] sm:$0xff]
      %v473 = vld [vmem:[#allocation2 + $0x50] sm:$0xff]
      %v474 = vld [vmem:[#allocation2 + $0x58] sm:$0xff]
      %v475 = vld [vmem:[#allocation2 + $0x60] sm:$0xff]
      %v476 = vld [vmem:[#allocation2 + $0x68] sm:$0xff]
      %v477 = vld [vmem:[#allocation2 + $0x70] sm:$0xff]
      %v478 = vld [vmem:[#allocation2 + $0x78] sm:$0xff]
      %v479 = vld [vmem:[#allocation2 + $0x80] sm:$0xff]
      %v480 = vld [vmem:[#allocation2 + $0x88] sm:$0xff]
      %v481 = vld [vmem:[#allocation2 + $0x90] sm:$0xff]
      %v482 = vld [vmem:[#allocation2 + $0x98] sm:$0xff]
      %v483 = vld [vmem:[#allocation2 + $0xa0] sm:$0xff]
      %v484 = vld [vmem:[#allocation2 + $0xa8] sm:$0xff]
      %v485 = vld [vmem:[#allocation2 + $0xb0] sm:$0xff]
      %v486 = vld [vmem:[#allocation2 + $0xb8] sm:$0xff]
      %v487 = vld [vmem:[#allocation2 + $0xc0] sm:$0xff]
      %v488 = vld [vmem:[#allocation2 + $0xc8] sm:$0xff]
      %v489 = vld [vmem:[#allocation2 + $0xd0] sm:$0xff]
      %v490 = vld [vmem:[#allocation2 + $0xd8] sm:$0xff]
      %v491 = vld [vmem:[#allocation2 + $0xe0] sm:$0xff]
      %v492 = vld [vmem:[#allocation2 + $0xe8] sm:$0xff]
      %v493 = vld [vmem:[#allocation2 + $0xf0] sm:$0xff]
      %v494 = vld [vmem:[#allocation2 + $0xf8] sm:$0xff]
      %v495 = vld [vmem:[#allocation2 + $0x100] sm:$0xff]
      %v496 = vld [vmem:[#allocation2 + $0x108] sm:$0xff]
      %v497 = vld [vmem:[#allocation2 + $0x110] sm:$0xff]
      %v498 = vld [vmem:[#allocation2 + $0x118] sm:$0xff]
      %v499 = vld [vmem:[%s2] sm:$0xff]
      %501 = vset.pattern.permute.xlu0 0
      %502 = vperm.xlu0 %501, %v499
      %v503 = vpop.permute.xlu0 %502
      %vm505 = vcmask 588800
      %v507 = vsel %vm505, %v462, 0
      %509 = vmatpush.msra.mxu0 0.0
      %510 = vmatpush.msra.mxu0 0.0
      %511 = vmatpush.msra.mxu0 0.0
      %512 = vmatpush.msra.mxu0 0.0
      %513 = vmatpush.msra.mxu0 0.0
      %514 = vmatpush.msra.mxu0 0.0
      %515 = vmatpush.msra.mxu0 0.0
      %516 = vmatpush.msra.mxu0 %v495
      %517 = vmatpush.msra.mxu0 %v491
      %518 = vmatpush.msra.mxu0 %v487
      %519 = vmatpush.msra.mxu0 %v483
      %520 = vmatpush.msra.mxu0 %v479
      %521 = vmatpush.msra.mxu0 %v475
      %522 = vmatpush.msra.mxu0 %v471
      %523 = vmatpush.msra.mxu0 %v467
      %524 = vmatpush.msra.mxu0 %v463
      %525 = vmatmul.f32.gmra.mxu0 %v507
      %v526 = vpop.f32.mrf.mxu0
      %v527 = vadd.f32 %v503, %v526
      %528 = vdwg.mxu0
      %529 = vmatpush.msra.mxu0 0.0
      %530 = vmatpush.msra.mxu0 0.0
      %531 = vmatpush.msra.mxu0 0.0
      %532 = vmatpush.msra.mxu0 0.0
      %533 = vmatpush.msra.mxu0 0.0
      %534 = vmatpush.msra.mxu0 0.0
      %535 = vmatpush.msra.mxu0 0.0
      %536 = vmatpush.msra.mxu0 %v496
      %537 = vmatpush.msra.mxu0 %v492
      %538 = vmatpush.msra.mxu0 %v488
      %539 = vmatpush.msra.mxu0 %v484
      %540 = vmatpush.msra.mxu0 %v480
      %541 = vmatpush.msra.mxu0 %v476
      %542 = vmatpush.msra.mxu0 %v472
      %543 = vmatpush.msra.mxu0 %v468
      %544 = vmatpush.msra.mxu0 %v464
      %545 = vmatmul.f32.gmra.mxu0 %v507
      %v546 = vpop.f32.mrf.mxu0
      %v547 = vadd.f32 %v503, %v546
      %548 = vdwg.mxu0
      %549 = vmatpush.msra.mxu0 0.0
      %550 = vmatpush.msra.mxu0 0.0
      %551 = vmatpush.msra.mxu0 0.0
      %552 = vmatpush.msra.mxu0 0.0
      %553 = vmatpush.msra.mxu0 0.0
      %554 = vmatpush.msra.mxu0 0.0
      %555 = vmatpush.msra.mxu0 0.0
      %556 = vmatpush.msra.mxu0 %v497
      %557 = vmatpush.msra.mxu0 %v493
      %558 = vmatpush.msra.mxu0 %v489
      %559 = vmatpush.msra.mxu0 %v485
      %560 = vmatpush.msra.mxu0 %v481
      %561 = vmatpush.msra.mxu0 %v477
      %562 = vmatpush.msra.mxu0 %v473
      %563 = vmatpush.msra.mxu0 %v469
      %564 = vmatpush.msra.mxu0 %v465
      %565 = vmatmul.f32.gmra.mxu0 %v507
      %v566 = vpop.f32.mrf.mxu0
      %v567 = vadd.f32 %v503, %v566
      %568 = vdwg.mxu0
      %569 = vmatpush.msra.mxu0 0.0
      %570 = vmatpush.msra.mxu0 0.0
      %571 = vmatpush.msra.mxu0 0.0
      %572 = vmatpush.msra.mxu0 0.0
      %573 = vmatpush.msra.mxu0 0.0
      %574 = vmatpush.msra.mxu0 0.0
      %575 = vmatpush.msra.mxu0 0.0
      %576 = vmatpush.msra.mxu0 %v498
      %577 = vmatpush.msra.mxu0 %v494
      %578 = vmatpush.msra.mxu0 %v490
      %579 = vmatpush.msra.mxu0 %v486
      %580 = vmatpush.msra.mxu0 %v482
      %581 = vmatpush.msra.mxu0 %v478
      %582 = vmatpush.msra.mxu0 %v474
      %583 = vmatpush.msra.mxu0 %v470
      %584 = vmatpush.msra.mxu0 %v466
      %585 = vmatmul.f32.gmra.mxu0 %v507
      %v586 = vpop.f32.mrf.mxu0
      %v587 = vadd.f32 %v503, %v586
      %588 = vdwg.mxu0
      %v589 = vmax.f32 %v527, 0.0
      %v590 = vmax.f32 %v547, 0.0
      %v591 = vmax.f32 %v567, 0.0
      %v592 = vmax.f32 %v587, 0.0
      %593 = vrot.lane.b32.xlu0 %v589, 17
      %v594 = vpop.permute.xlu0 %593
      %595 = vrot.lane.b32.xlu0 %v590, 17
      %v596 = vpop.permute.xlu0 %595
      %597 = vrot.lane.b32.xlu0 %v591, 17
      %v598 = vpop.permute.xlu0 %597
      %599 = vrot.lane.b32.xlu0 %v592, 17
      %v600 = vpop.permute.xlu0 %599
      %v601 = vsel %vm266, %v598, %v600
      %v602 = vsel %vm266, %v596, %v598
      %v603 = vsel %vm266, %v594, %v596
      %v604 = vsel %vm266, %v600, %v594
      %v605 = vld [vmem:[%s5] sm:$0xff]
      %v606 = vld [vmem:[%s5 + $0x8] sm:$0xff]
      %v607 = vld [vmem:[%s5 + $0x10] sm:$0xff]
      %v608 = vld [vmem:[%s5 + $0x18] sm:$0xff]
      %v609 = vmul.f32 %v604, %v605
      %v610 = vmul.f32 %v603, %v606
      %v611 = vmul.f32 %v602, %v607
      %v612 = vmul.f32 %v601, %v608
      %613 = vst [vmem:[#allocation2] sm:$0xff] %v609
      %614 = vst [vmem:[#allocation2 + $0x8] sm:$0xff] %v610
      %615 = vst [vmem:[#allocation2 + $0x10] sm:$0xff] %v611
      %616 = vst [vmem:[#allocation2 + $0x18] sm:$0xff] %v612
      %617 = vrot.lane.b32.xlu0 %v589, 16
      %v618 = vpop.permute.xlu0 %617
      %619 = vrot.lane.b32.xlu0 %v590, 16
      %v620 = vpop.permute.xlu0 %619
      %621 = vrot.lane.b32.xlu0 %v591, 16
      %v622 = vpop.permute.xlu0 %621
      %623 = vrot.lane.b32.xlu0 %v592, 16
      %v624 = vpop.permute.xlu0 %623
      %v625 = vsel %vm291, %v622, %v624
      %v626 = vsel %vm291, %v620, %v622
      %v627 = vsel %vm291, %v618, %v620
      %v628 = vsel %vm291, %v624, %v618
      %v629 = vld [vmem:[%s5 + $0x20] sm:$0xff]
      %v630 = vld [vmem:[%s5 + $0x28] sm:$0xff]
      %v631 = vld [vmem:[%s5 + $0x30] sm:$0xff]
      %v632 = vld [vmem:[%s5 + $0x38] sm:$0xff]
      %v633 = vmul.f32 %v628, %v629
      %v634 = vmul.f32 %v627, %v630
      %v635 = vmul.f32 %v626, %v631
      %v636 = vmul.f32 %v625, %v632
      %637 = vst [vmem:[#allocation2 + $0x20] sm:$0xff] %v633
      %638 = vst [vmem:[#allocation2 + $0x28] sm:$0xff] %v634
      %639 = vst [vmem:[#allocation2 + $0x30] sm:$0xff] %v635
      %640 = vst [vmem:[#allocation2 + $0x38] sm:$0xff] %v636
      %641 = vrot.lane.b32.xlu0 %v589, 15
      %v642 = vpop.permute.xlu0 %641
      %643 = vrot.lane.b32.xlu0 %v590, 15
      %v644 = vpop.permute.xlu0 %643
      %645 = vrot.lane.b32.xlu0 %v591, 15
      %v646 = vpop.permute.xlu0 %645
      %647 = vrot.lane.b32.xlu0 %v592, 15
      %v648 = vpop.permute.xlu0 %647
      %v649 = vsel %vm316, %v646, %v648
      %v650 = vsel %vm316, %v644, %v646
      %v651 = vsel %vm316, %v642, %v644
      %v652 = vsel %vm316, %v648, %v642
      %v653 = vld [vmem:[%s5 + $0x40] sm:$0xff]
      %v654 = vld [vmem:[%s5 + $0x48] sm:$0xff]
      %v655 = vld [vmem:[%s5 + $0x50] sm:$0xff]
      %v656 = vld [vmem:[%s5 + $0x58] sm:$0xff]
      %v657 = vmul.f32 %v652, %v653
      %v658 = vmul.f32 %v651, %v654
      %v659 = vmul.f32 %v650, %v655
      %v660 = vmul.f32 %v649, %v656
      %661 = vst [vmem:[#allocation2 + $0x40] sm:$0xff] %v657
      %662 = vst [vmem:[#allocation2 + $0x48] sm:$0xff] %v658
      %663 = vst [vmem:[#allocation2 + $0x50] sm:$0xff] %v659
      %664 = vst [vmem:[#allocation2 + $0x58] sm:$0xff] %v660
      %665 = vrot.lane.b32.xlu0 %v589, 1
      %v666 = vpop.permute.xlu0 %665
      %667 = vrot.lane.b32.xlu0 %v590, 1
      %v668 = vpop.permute.xlu0 %667
      %669 = vrot.lane.b32.xlu0 %v591, 1
      %v670 = vpop.permute.xlu0 %669
      %671 = vrot.lane.b32.xlu0 %v592, 1
      %v672 = vpop.permute.xlu0 %671
      %v673 = vsel %vm341, %v670, %v672
      %v674 = vsel %vm341, %v668, %v670
      %v675 = vsel %vm341, %v666, %v668
      %v676 = vsel %vm341, %v672, %v666
      %v677 = vld [vmem:[%s5 + $0x60] sm:$0xff]
      %v678 = vld [vmem:[%s5 + $0x68] sm:$0xff]
      %v679 = vld [vmem:[%s5 + $0x70] sm:$0xff]
      %v680 = vld [vmem:[%s5 + $0x78] sm:$0xff]
      %v681 = vmul.f32 %v676, %v677
      %v682 = vmul.f32 %v675, %v678
      %v683 = vmul.f32 %v674, %v679
      %v684 = vmul.f32 %v673, %v680
      %685 = vst [vmem:[#allocation2 + $0x60] sm:$0xff] %v681
      %686 = vst [vmem:[#allocation2 + $0x68] sm:$0xff] %v682
      %687 = vst [vmem:[#allocation2 + $0x70] sm:$0xff] %v683
      %688 = vst [vmem:[#allocation2 + $0x78] sm:$0xff] %v684
      %689 = vst [vmem:[#allocation2 + $0x80] sm:$0xff] %v589
      %690 = vst [vmem:[#allocation2 + $0x88] sm:$0xff] %v590
      %691 = vst [vmem:[#allocation2 + $0x90] sm:$0xff] %v591
      %692 = vst [vmem:[#allocation2 + $0x98] sm:$0xff] %v592
      %693 = vrot.lane.b32.xlu0 %v589, 127
      %v694 = vpop.permute.xlu0 %693
      %695 = vrot.lane.b32.xlu0 %v590, 127
      %v696 = vpop.permute.xlu0 %695
      %697 = vrot.lane.b32.xlu0 %v591, 127
      %v698 = vpop.permute.xlu0 %697
      %699 = vrot.lane.b32.xlu0 %v592, 127
      %v700 = vpop.permute.xlu0 %699
      %v701 = vsel %vm370, %v698, %v700
      %v702 = vsel %vm370, %v696, %v698
      %v703 = vsel %vm370, %v694, %v696
      %v704 = vsel %vm370, %v700, %v694
      %v705 = vld [vmem:[%s5 + $0xa0] sm:$0xff]
      %v706 = vld [vmem:[%s5 + $0xa8] sm:$0xff]
      %v707 = vld [vmem:[%s5 + $0xb0] sm:$0xff]
      %v708 = vld [vmem:[%s5 + $0xb8] sm:$0xff]
      %v709 = vmul.f32 %v703, %v705
      %v710 = vmul.f32 %v702, %v706
      %v711 = vmul.f32 %v701, %v707
      %v712 = vmul.f32 %v704, %v708
      %713 = vst [vmem:[#allocation2 + $0xa0] sm:$0xff] %v709
      %714 = vst [vmem:[#allocation2 + $0xa8] sm:$0xff] %v710
      %715 = vst [vmem:[#allocation2 + $0xb0] sm:$0xff] %v711
      %716 = vst [vmem:[#allocation2 + $0xb8] sm:$0xff] %v712
      %717 = vrot.lane.b32.xlu0 %v589, 113
      %v718 = vpop.permute.xlu0 %717
      %719 = vrot.lane.b32.xlu0 %v590, 113
      %v720 = vpop.permute.xlu0 %719
      %721 = vrot.lane.b32.xlu0 %v591, 113
      %v722 = vpop.permute.xlu0 %721
      %723 = vrot.lane.b32.xlu0 %v592, 113
      %v724 = vpop.permute.xlu0 %723
      %v725 = vsel %vm395, %v722, %v724
      %v726 = vsel %vm395, %v720, %v722
      %v727 = vsel %vm395, %v718, %v720
      %v728 = vsel %vm395, %v724, %v718
      %v729 = vld [vmem:[%s5 + $0xc0] sm:$0xff]
      %v730 = vld [vmem:[%s5 + $0xc8] sm:$0xff]
      %v731 = vld [vmem:[%s5 + $0xd0] sm:$0xff]
      %v732 = vld [vmem:[%s5 + $0xd8] sm:$0xff]
      %v733 = vmul.f32 %v727, %v729
      %v734 = vmul.f32 %v726, %v730
      %v735 = vmul.f32 %v725, %v731
      %v736 = vmul.f32 %v728, %v732
      %737 = vst [vmem:[#allocation2 + $0xc0] sm:$0xff] %v733
      %738 = vst [vmem:[#allocation2 + $0xc8] sm:$0xff] %v734
      %739 = vst [vmem:[#allocation2 + $0xd0] sm:$0xff] %v735
      %740 = vst [vmem:[#allocation2 + $0xd8] sm:$0xff] %v736
      %741 = vrot.lane.b32.xlu0 %v589, 112
      %v742 = vpop.permute.xlu0 %741
      %743 = vrot.lane.b32.xlu0 %v590, 112
      %v744 = vpop.permute.xlu0 %743
      %745 = vrot.lane.b32.xlu0 %v591, 112
      %v746 = vpop.permute.xlu0 %745
      %747 = vrot.lane.b32.xlu0 %v592, 112
      %v748 = vpop.permute.xlu0 %747
      %v749 = vsel %vm420, %v746, %v748
      %v750 = vsel %vm420, %v744, %v746
      %v751 = vsel %vm420, %v742, %v744
      %v752 = vsel %vm420, %v748, %v742
      %v753 = vld [vmem:[%s5 + $0xe0] sm:$0xff]
      %v754 = vld [vmem:[%s5 + $0xe8] sm:$0xff]
      %v755 = vld [vmem:[%s5 + $0xf0] sm:$0xff]
      %v756 = vld [vmem:[%s5 + $0xf8] sm:$0xff]
      %v757 = vmul.f32 %v751, %v753
      %v758 = vmul.f32 %v750, %v754
      %v759 = vmul.f32 %v749, %v755
      %v760 = vmul.f32 %v752, %v756
      %761 = vst [vmem:[#allocation2 + $0xe0] sm:$0xff] %v757
      %762 = vst [vmem:[#allocation2 + $0xe8] sm:$0xff] %v758
      %763 = vst [vmem:[#allocation2 + $0xf0] sm:$0xff] %v759
      %764 = vst [vmem:[#allocation2 + $0xf8] sm:$0xff] %v760
      %765 = vrot.lane.b32.xlu0 %v589, 111
      %v766 = vpop.permute.xlu0 %765
      %767 = vrot.lane.b32.xlu0 %v590, 111
      %v768 = vpop.permute.xlu0 %767
      %769 = vrot.lane.b32.xlu0 %v591, 111
      %v770 = vpop.permute.xlu0 %769
      %771 = vrot.lane.b32.xlu0 %v592, 111
      %v772 = vpop.permute.xlu0 %771
      %v773 = vsel %vm445, %v770, %v772
      %v774 = vsel %vm445, %v768, %v770
      %v775 = vsel %vm445, %v766, %v768
      %v776 = vsel %vm445, %v772, %v766
      %v777 = vld [vmem:[%s5 + $0x100] sm:$0xff]
      %v778 = vld [vmem:[%s5 + $0x108] sm:$0xff]
      %v779 = vld [vmem:[%s5 + $0x110] sm:$0xff]
      %v780 = vld [vmem:[%s5 + $0x118] sm:$0xff]
      %v781 = vmul.f32 %v775, %v777
      %v782 = vmul.f32 %v774, %v778
      %v783 = vmul.f32 %v773, %v779
      %v784 = vmul.f32 %v776, %v780
      %785 = vst [vmem:[#allocation2 + $0x100] sm:$0xff] %v781
      %786 = vst [vmem:[#allocation2 + $0x108] sm:$0xff] %v782
      %787 = vst [vmem:[#allocation2 + $0x110] sm:$0xff] %v783
      %788 = vst [vmem:[#allocation2 + $0x118] sm:$0xff] %v784
      %v789 = vld [vmem:[%s3] sm:$0xff]
      %v790 = vld [vmem:[#allocation2] sm:$0xff]
      %v791 = vld [vmem:[#allocation2 + $0x8] sm:$0xff]
      %v792 = vld [vmem:[#allocation2 + $0x10] sm:$0xff]
      %v793 = vld [vmem:[#allocation2 + $0x18] sm:$0xff]
      %v794 = vld [vmem:[#allocation2 + $0x20] sm:$0xff]
      %v795 = vld [vmem:[#allocation2 + $0x28] sm:$0xff]
      %v796 = vld [vmem:[#allocation2 + $0x30] sm:$0xff]
      %v797 = vld [vmem:[#allocation2 + $0x38] sm:$0xff]
      %v798 = vld [vmem:[#allocation2 + $0x40] sm:$0xff]
      %v799 = vld [vmem:[#allocation2 + $0x48] sm:$0xff]
      %v800 = vld [vmem:[#allocation2 + $0x50] sm:$0xff]
      %v801 = vld [vmem:[#allocation2 + $0x58] sm:$0xff]
      %v802 = vld [vmem:[#allocation2 + $0x60] sm:$0xff]
      %v803 = vld [vmem:[#allocation2 + $0x68] sm:$0xff]
      %v804 = vld [vmem:[#allocation2 + $0x70] sm:$0xff]
      %v805 = vld [vmem:[#allocation2 + $0x78] sm:$0xff]
      %v806 = vld [vmem:[#allocation2 + $0x80] sm:$0xff]
      %v807 = vld [vmem:[#allocation2 + $0x88] sm:$0xff]
      %v808 = vld [vmem:[#allocation2 + $0x90] sm:$0xff]
      %v809 = vld [vmem:[#allocation2 + $0x98] sm:$0xff]
      %v810 = vld [vmem:[#allocation2 + $0xa0] sm:$0xff]
      %v811 = vld [vmem:[#allocation2 + $0xa8] sm:$0xff]
      %v812 = vld [vmem:[#allocation2 + $0xb0] sm:$0xff]
      %v813 = vld [vmem:[#allocation2 + $0xb8] sm:$0xff]
      %v814 = vld [vmem:[#allocation2 + $0xc0] sm:$0xff]
      %v815 = vld [vmem:[#allocation2 + $0xc8] sm:$0xff]
      %v816 = vld [vmem:[#allocation2 + $0xd0] sm:$0xff]
      %v817 = vld [vmem:[#allocation2 + $0xd8] sm:$0xff]
      %v818 = vld [vmem:[#allocation2 + $0xe0] sm:$0xff]
      %v819 = vld [vmem:[#allocation2 + $0xe8] sm:$0xff]
      %v820 = vld [vmem:[#allocation2 + $0xf0] sm:$0xff]
      %v821 = vld [vmem:[#allocation2 + $0xf8] sm:$0xff]
      %v822 = vld [vmem:[#allocation2 + $0x100] sm:$0xff]
      %v823 = vld [vmem:[#allocation2 + $0x108] sm:$0xff]
      %v824 = vld [vmem:[#allocation2 + $0x110] sm:$0xff]
      %v825 = vld [vmem:[#allocation2 + $0x118] sm:$0xff]
      %v826 = vld [vmem:[%s4] sm:$0xff]
      %828 = vset.pattern.permute.xlu0 0
      %829 = vperm.xlu0 %828, %v826
      %v830 = vpop.permute.xlu0 %829
      %v833 = vsel %vm505, %v789, 0
      %835 = vmatpush.msra.mxu0 0.0
      %836 = vmatpush.msra.mxu0 0.0
      %837 = vmatpush.msra.mxu0 0.0
      %838 = vmatpush.msra.mxu0 0.0
      %839 = vmatpush.msra.mxu0 0.0
      %840 = vmatpush.msra.mxu0 0.0
      %841 = vmatpush.msra.mxu0 0.0
      %842 = vmatpush.msra.mxu0 %v822
      %843 = vmatpush.msra.mxu0 %v818
      %844 = vmatpush.msra.mxu0 %v814
      %845 = vmatpush.msra.mxu0 %v810
      %846 = vmatpush.msra.mxu0 %v806
      %847 = vmatpush.msra.mxu0 %v802
      %848 = vmatpush.msra.mxu0 %v798
      %849 = vmatpush.msra.mxu0 %v794
      %850 = vmatpush.msra.mxu0 %v790
      %851 = vmatmul.f32.gmra.mxu0 %v833
      %v852 = vpop.f32.mrf.mxu0
      %v853 = vadd.f32 %v830, %v852
      %854 = vdwg.mxu0
      %855 = vmatpush.msra.mxu0 0.0
      %856 = vmatpush.msra.mxu0 0.0
      %857 = vmatpush.msra.mxu0 0.0
      %858 = vmatpush.msra.mxu0 0.0
      %859 = vmatpush.msra.mxu0 0.0
      %860 = vmatpush.msra.mxu0 0.0
      %861 = vmatpush.msra.mxu0 0.0
      %862 = vmatpush.msra.mxu0 %v823
      %863 = vmatpush.msra.mxu0 %v819
      %864 = vmatpush.msra.mxu0 %v815
      %865 = vmatpush.msra.mxu0 %v811
      %866 = vmatpush.msra.mxu0 %v807
      %867 = vmatpush.msra.mxu0 %v803
      %868 = vmatpush.msra.mxu0 %v799
      %869 = vmatpush.msra.mxu0 %v795
      %870 = vmatpush.msra.mxu0 %v791
      %871 = vmatmul.f32.gmra.mxu0 %v833
      %v872 = vpop.f32.mrf.mxu0
      %v873 = vadd.f32 %v830, %v872
      %874 = vdwg.mxu0
      %875 = vmatpush.msra.mxu0 0.0
      %876 = vmatpush.msra.mxu0 0.0
      %877 = vmatpush.msra.mxu0 0.0
      %878 = vmatpush.msra.mxu0 0.0
      %879 = vmatpush.msra.mxu0 0.0
      %880 = vmatpush.msra.mxu0 0.0
      %881 = vmatpush.msra.mxu0 0.0
      %882 = vmatpush.msra.mxu0 %v824
      %883 = vmatpush.msra.mxu0 %v820
      %884 = vmatpush.msra.mxu0 %v816
      %885 = vmatpush.msra.mxu0 %v812
      %886 = vmatpush.msra.mxu0 %v808
      %887 = vmatpush.msra.mxu0 %v804
      %888 = vmatpush.msra.mxu0 %v800
      %889 = vmatpush.msra.mxu0 %v796
      %890 = vmatpush.msra.mxu0 %v792
      %891 = vmatmul.f32.gmra.mxu0 %v833
      %v892 = vpop.f32.mrf.mxu0
      %v893 = vadd.f32 %v830, %v892
      %894 = vdwg.mxu0
      %895 = vmatpush.msra.mxu0 0.0
      %896 = vmatpush.msra.mxu0 0.0
      %897 = vmatpush.msra.mxu0 0.0
      %898 = vmatpush.msra.mxu0 0.0
      %899 = vmatpush.msra.mxu0 0.0
      %900 = vmatpush.msra.mxu0 0.0
      %901 = vmatpush.msra.mxu0 0.0
      %902 = vmatpush.msra.mxu0 %v825
      %903 = vmatpush.msra.mxu0 %v821
      %904 = vmatpush.msra.mxu0 %v817
      %905 = vmatpush.msra.mxu0 %v813
      %906 = vmatpush.msra.mxu0 %v809
      %907 = vmatpush.msra.mxu0 %v805
      %908 = vmatpush.msra.mxu0 %v801
      %909 = vmatpush.msra.mxu0 %v797
      %910 = vmatpush.msra.mxu0 %v793
      %911 = vmatmul.f32.gmra.mxu0 %v833
      %v912 = vpop.f32.mrf.mxu0
      %v913 = vadd.f32 %v830, %v912
      %914 = vdwg.mxu0
      %v915 = vmax.f32 %v853, 0.0
      %v916 = vmax.f32 %v873, 0.0
      %v917 = vmax.f32 %v893, 0.0
      %v918 = vmax.f32 %v913, 0.0
      %v919 = vsub.f32 %v589, %v591
      %v920 = vsub.f32 %v590, %v592
      %v921 = vand.u32 2147483647, %v919
      %v922 = vand.u32 2147483647, %v920
      %vm923 = vcmp.lt.f32.partialorder %v921, 1.0
      %vm924 = vcmp.lt.f32.partialorder %v922, 1.0
      %v925 = vmul.f32 %v919, 0.5
      %v926 = vmul.f32 %v920, 0.5
      %v927 = vmul.f32 %v925, %v919
      %v928 = vmul.f32 %v926, %v920
      %v929 = vsub.f32 %v921, 0.5
      %v930 = vsub.f32 %v922, 0.5
      %v931 = vsel %vm923, %v927, %v929
      %v932 = vsel %vm924, %v928, %v930
      %v933 = vrot.slane %v931, 4
      %v934 = vadd.f32 %v931, %v933
      %v935 = vrot.slane %v934, 2
      %v936 = vadd.f32 %v934, %v935
      %v937 = vrot.slane %v936, 1
      %v938 = vadd.f32 %v936, %v937
      %v939 = vrot.slane %v932, 4
      %v940 = vadd.f32 %v932, %v939
      %v941 = vrot.slane %v940, 2
      %v942 = vadd.f32 %v940, %v941
      %v943 = vrot.slane %v942, 1
      %v944 = vadd.f32 %v942, %v943
      %v947 = vrot.slane %v944, 7
      %vm948 = vcmask 1040384
      %v949 = vsel %vm948, %v938, %v947
      %v951 = vlaneseq
      %vm952 = vcmp.ge.s32.totalorder %v951, 0
      %vm953 = vcmp.lt.s32.totalorder %v951, 256
      %vm954 = vmand %vm952, %vm953
      %955 = vst.msk [vmem:[%s251] ss:$2 sm:$0x3] %vm954, %v949
      %v956 = vsub.f32 %v915, %v917
      %v957 = vsub.f32 %v916, %v918
      %v958 = vand.u32 2147483647, %v956
      %v959 = vand.u32 2147483647, %v957
      %vm960 = vcmp.lt.f32.partialorder %v958, 1.0
      %vm961 = vcmp.lt.f32.partialorder %v959, 1.0
      %v962 = vmul.f32 %v956, 0.5
      %v963 = vmul.f32 %v957, 0.5
      %v964 = vmul.f32 %v962, %v956
      %v965 = vmul.f32 %v963, %v957
      %v966 = vsub.f32 %v958, 0.5
      %v967 = vsub.f32 %v959, 0.5
      %v968 = vsel %vm960, %v964, %v966
      %v969 = vsel %vm961, %v965, %v967
      %v970 = vrot.slane %v968, 4
      %v971 = vadd.f32 %v968, %v970
      %v972 = vrot.slane %v971, 2
      %v973 = vadd.f32 %v971, %v972
      %v974 = vrot.slane %v973, 1
      %v975 = vadd.f32 %v973, %v974
      %v976 = vrot.slane %v969, 4
      %v977 = vadd.f32 %v969, %v976
      %v978 = vrot.slane %v977, 2
      %v979 = vadd.f32 %v977, %v978
      %v980 = vrot.slane %v979, 1
      %v981 = vadd.f32 %v979, %v980
      %v984 = vrot.slane %v981, 7
      %v985 = vsel %vm948, %v975, %v984
      %s987 = scalar_lea.vmem %s251, 1
      %988 = vst.msk [vmem:[%s987] ss:$2 sm:$0x3] %vm954, %v985
      %p989 = scmp.lt.s32.totalorder %s17, 1
      %s990 = scalar_select %p989, %s17, 1
      %s991 = smul.addr %s990, 2
      %s992 = smul.addr %s991, 2
      %s993 = scalar_lea.vmem %s6, %s992
      // Predicated region
      $region45: #{submodel_forward.1} parent=43 // pred_check
        %p994 = pneg %p166
      $region46: #{submodel_forward.1} parent=43 // pred_check_branch
        %996 = sbr.rel (%p994) target = $region48
      $region47: #{submodel_forward.1} parent=43 // pred_region
        _
      $region48: #{submodel_forward.1} parent=43 // pred_fallthru
        _
    $region44: #{submodel_forward.1} parent=5 // pred_fallthru
      _
    %p997 = scmp.le.s32.totalorder 2, %s12
    // Predicated region
    $region49: #{submodel_forward.1} parent=5 // pred_check
      %p998 = pneg %p997
    $region50: #{submodel_forward.1} parent=5 // pred_check_branch
      %1000 = sbr.rel (%p998) target = $region52
    $region51: #{submodel_forward.1} parent=5 // pred_region
      %s1001 = ssub.s32 %s12, 2
      // Predicated region
      $region53: #{submodel_forward.1} parent=51 // pred_check
        %p1002 = pneg %p172
      $region54: #{submodel_forward.1} parent=51 // pred_check_branch
        %1004 = sbr.rel (%p1002) target = $region56
      $region55: #{submodel_forward.1} parent=51 // pred_region
        %p1005 = scmp.lt.s32.totalorder %s18, 1
        %s1006 = scalar_select %p1005, %s18, 1
        %s1007 = smul.addr %s1006, 2
        %s1008 = smul.addr %s1007, 2
        %s1009 = scalar_lea.vmem %s6, %s1008
      $region56: #{submodel_forward.1} parent=51 // pred_fallthru
        _
    $region52: #{submodel_forward.1} parent=5 // pred_fallthru
      _
  $region6: #{submodel_forward.1} parent=0 // loop_footer
    %s16 = sadd.s32 1, %s12
  $region7: #{submodel_forward.1} parent=0 // loop_footer_branch
    %11 = sbr.rel target = $region3
  $region8: #{submodel_forward.1} parent=0 // loop_exit
    _

</llo_original>
